<compile_context>
chip_gen: v7x
topology: tpu7x:2x2x1
jax: 0.10.0
libtpu: 0.0.40
codegen_flags: <defaults>
</compile_context>

<pallas_src>
import functools
import math

import jax
import jax.numpy as jnp
from jax import lax
from jax.experimental import pallas as pl
from jax.experimental.pallas import tpu as pltpu


def self_attention_kernel(n_head, causal,
                          x_ref, wqkv_ref, bqkv_ref, wproj_ref, bproj_ref,
                          o_ref):
    x = x_ref[0]                               # (T, C) f32, current batch element
    T, C = x.shape
    hd = C // n_head
    scale = 1.0 / math.sqrt(hd)

    xb = x.astype(jnp.bfloat16)

    def proj(i):
        # lane-dense (T, C) projection; bf16 MXU inputs, f32 accumulation
        w = wqkv_ref[i].astype(jnp.bfloat16)                           # (C, C)
        return jnp.dot(xb, w, preferred_element_type=jnp.float32) + bqkv_ref[i]

    q = proj(0) * scale                        # fold 1/sqrt(hd) into the small (T, C) q
    k = proj(1)
    v = proj(2)

    def to_heads(z):                           # (T, C) -> (H, T, hd); cast at MXU input
        zh = pltpu.einshape("thd->htd", z.reshape(T, n_head, hd))
        return zh.astype(jnp.bfloat16)

    qh, kh, vh = to_heads(q), to_heads(k), to_heads(v)

    # one head-batched contraction for the scores (contract on hd; no explicit k.T)
    att = jnp.einsum("htd,hsd->hts", qh, kh,
                     preferred_element_type=jnp.float32)               # (H, T, T) f32

    if causal:
        row = lax.broadcasted_iota(jnp.int32, (T, T), 0)
        col = lax.broadcasted_iota(jnp.int32, (T, T), 1)
        keep = (col <= row)[None, :, :]                                # (1, T, T) bool
        att = jnp.where(keep, att, jnp.float32(-1e30))

    # numerically stable softmax, normalization deferred until after p.v
    att = att - jnp.max(att, axis=-1, keepdims=True)
    p = jnp.exp(att)                                                   # (H, T, T) f32
    l = jnp.sum(p, axis=-1, keepdims=True)                             # (H, T, 1) f32

    pv = jnp.einsum("hts,hsd->htd", p.astype(jnp.bfloat16), vh,
                    preferred_element_type=jnp.float32)                # (H, T, hd) f32
    yh = pv * pl.reciprocal(l, approx=True)                            # deferred 1/l (EUP)

    # heads back to the lane-dense (T, C) layout, then the output projection
    y = pltpu.einshape("htd->thd", yh).reshape(T, C).astype(jnp.bfloat16)
    out = jnp.dot(y, wproj_ref[...].astype(jnp.bfloat16),
                  preferred_element_type=jnp.float32) + bproj_ref[...]

    o_ref[0] = out.astype(o_ref.dtype)


def self_attention_block(x, params, *, n_head, causal=True):
    B, T, C = x.shape
    wqkv, bqkv = params["wqkv"], params["bqkv"]       # (3, C, C), (3, 1, C)
    wproj, bproj = params["wproj"], params["bproj"]   # (C, C),   (1, C)

    kernel = functools.partial(self_attention_kernel, n_head, causal)
    return pl.pallas_call(
        kernel,
        out_shape=jax.ShapeDtypeStruct((B, T, C), x.dtype),
        grid=(B,),
        in_specs=[
            pl.BlockSpec((1, T, C), lambda b: (b, 0, 0)),
            pl.BlockSpec((3, C, C), lambda b: (0, 0, 0)),
            pl.BlockSpec((3, 1, C), lambda b: (0, 0, 0)),
            pl.BlockSpec((C, C), lambda b: (0, 0)),
            pl.BlockSpec((1, C), lambda b: (0, 0)),
        ],
        out_specs=pl.BlockSpec((1, T, C), lambda b: (b, 0, 0)),
        compiler_params=pltpu.CompilerParams(
            dimension_semantics=("parallel",),
            vmem_limit_bytes=48 * 1024 * 1024,
        ),
    )(x, wqkv, bqkv, wproj, bproj)


# ---------------- pure-JAX f32 reference (sanity check) ----------------
def self_attention_ref(x, wqkv, bqkv, wproj, bproj, n_head, causal=True):
    B, T, C = x.shape
    hd = C // n_head
    q = x @ wqkv[0] + bqkv[0]
    k = x @ wqkv[1] + bqkv[1]
    v = x @ wqkv[2] + bqkv[2]

    def heads(z):
        return z.reshape(B, T, n_head, hd).transpose(0, 2, 1, 3)

    qh, kh, vh = heads(q), heads(k), heads(v)
    att = jnp.einsum("bhtd,bhsd->bhts", qh, kh) / math.sqrt(hd)
    if causal:
        mask = jnp.tril(jnp.ones((T, T), bool))
        att = jnp.where(mask, att, -jnp.inf)
    p = jax.nn.softmax(att, axis=-1)
    y = jnp.einsum("bhts,bhsd->bhtd", p, vh).transpose(0, 2, 1, 3).reshape(B, T, C)
    return y @ wproj + bproj


if __name__ == "__main__":
    # small config: n_embd=32, n_head=4, seq=8, batch=2, bias=True, causal=True
    B, T, C, n_head = 2, 8, 32, 4
    key = jax.random.PRNGKey(0)
    ks = jax.random.split(key, 5)

    def rnd(k, shape, s=0.05):
        return (s * jax.random.normal(k, shape)).astype(jnp.float32)

    x = jax.random.normal(ks[0], (B, T, C), jnp.float32)
    params = dict(
        wqkv=rnd(ks[1], (3, C, C)),     # stacked [W_q, W_k, W_v], each (C, C)
        bqkv=rnd(ks[2], (3, 1, C)),     # stacked [b_q, b_k, b_v]
        wproj=rnd(ks[3], (C, C)),
        bproj=rnd(ks[4], (1, C)),
    )

    out = self_attention_block(x, params, n_head=n_head, causal=True)
    out = jax.block_until_ready(out)

    ref = self_attention_ref(x, params["wqkv"], params["bqkv"],
                             params["wproj"], params["bproj"], n_head, causal=True)
    assert out.shape == (B, T, C)
    # bf16 matmul inputs + approx reciprocal vs f32 reference -> loosened tolerance
    assert jnp.allclose(out, ref, atol=1e-2, rtol=1e-2), "mismatch vs reference"
    print("KERNEL_OK")
</pallas_src>

<mosaic_0001>
module attributes {stable_mosaic.version = 11 : i64} {
  func.func @self_attention_kernel(%arg0: i32, %arg1: memref<1x8x32xf32, #tpu.memory_space<vmem>>, %arg2: memref<3x32x32xf32, #tpu.memory_space<vmem>>, %arg3: memref<3x1x32xf32, #tpu.memory_space<vmem>>, %arg4: memref<32x32xf32, #tpu.memory_space<vmem>>, %arg5: memref<1x32xf32, #tpu.memory_space<vmem>>, %arg6: memref<1x8x32xf32, #tpu.memory_space<vmem>>) attributes {dimension_semantics = [#tpu.dimension_semantics<parallel>], iteration_bounds = array<i64: 2>, scalar_prefetch = 0 : i64, scratch_operands = 0 : i64, tpu.core_type = #tpu.core_type<tc>, window_params = [{transform_indices = @transform_0, window_bounds = array<i64: 1, 8, 32>}, {pipeline_mode = #tpu.pipeline_mode<synchronous>, transform_indices = @transform_1, window_bounds = array<i64: 3, 32, 32>}, {pipeline_mode = #tpu.pipeline_mode<synchronous>, transform_indices = @transform_2, window_bounds = array<i64: 3, 1, 32>}, {pipeline_mode = #tpu.pipeline_mode<synchronous>, transform_indices = @transform_3, window_bounds = array<i64: 32, 32>}, {pipeline_mode = #tpu.pipeline_mode<synchronous>, transform_indices = @transform_4, window_bounds = array<i64: 1, 32>}, {transform_indices = @transform_5, window_bounds = array<i64: 1, 8, 32>}]} {
    %c0 = arith.constant 0 : index
    %c0_0 = arith.constant 0 : index
    %c0_1 = arith.constant 0 : index
    %0 = vector.load %arg1[%c0, %c0_0, %c0_1] : memref<1x8x32xf32, #tpu.memory_space<vmem>>, vector<1x8x32xf32>
    %1 = vector.shape_cast %0 : vector<1x8x32xf32> to vector<8x32xf32>
    %2 = arith.truncf %1 : vector<8x32xf32> to vector<8x32xbf16>
    %c0_2 = arith.constant 0 : index
    %c0_3 = arith.constant 0 : index
    %c0_4 = arith.constant 0 : index
    %3 = vector.load %arg2[%c0_2, %c0_3, %c0_4] : memref<3x32x32xf32, #tpu.memory_space<vmem>>, vector<1x32x32xf32>
    %4 = vector.shape_cast %3 : vector<1x32x32xf32> to vector<32x32xf32>
    %5 = arith.truncf %4 : vector<32x32xf32> to vector<32x32xbf16>
    %cst = arith.constant dense<0.000000e+00> : vector<8x32xf32>
    %6 = tpu.matmul %2, %5, %cst {dimension_numbers = #tpu.dot_dimension_numbers<[1], [0], [0], [1], [0, 0, 1, 1], [], []>} : vector<8x32xbf16>, vector<32x32xbf16>, vector<8x32xf32> -> vector<8x32xf32>
    %c0_5 = arith.constant 0 : index
    %c0_6 = arith.constant 0 : index
    %c0_7 = arith.constant 0 : index
    %7 = vector.load %arg3[%c0_5, %c0_6, %c0_7] : memref<3x1x32xf32, #tpu.memory_space<vmem>>, vector<1x1x32xf32>
    %8 = vector.shape_cast %7 : vector<1x1x32xf32> to vector<1x32xf32>
    %9 = vector.broadcast %8 : vector<1x32xf32> to vector<8x32xf32>
    %10 = arith.addf %6, %9 : vector<8x32xf32>
    %cst_8 = arith.constant 0.353553385 : f32
    %11 = vector.broadcast %cst_8 : f32 to vector<8x32xf32>
    %12 = arith.mulf %10, %11 : vector<8x32xf32>
    %c1 = arith.constant 1 : index
    %c0_9 = arith.constant 0 : index
    %c0_10 = arith.constant 0 : index
    %13 = vector.load %arg2[%c1, %c0_9, %c0_10] : memref<3x32x32xf32, #tpu.memory_space<vmem>>, vector<1x32x32xf32>
    %14 = vector.shape_cast %13 : vector<1x32x32xf32> to vector<32x32xf32>
    %15 = arith.truncf %14 : vector<32x32xf32> to vector<32x32xbf16>
    %cst_11 = arith.constant dense<0.000000e+00> : vector<8x32xf32>
    %16 = tpu.matmul %2, %15, %cst_11 {dimension_numbers = #tpu.dot_dimension_numbers<[1], [0], [0], [1], [0, 0, 1, 1], [], []>} : vector<8x32xbf16>, vector<32x32xbf16>, vector<8x32xf32> -> vector<8x32xf32>
    %c1_12 = arith.constant 1 : index
    %c0_13 = arith.constant 0 : index
    %c0_14 = arith.constant 0 : index
    %17 = vector.load %arg3[%c1_12, %c0_13, %c0_14] : memref<3x1x32xf32, #tpu.memory_space<vmem>>, vector<1x1x32xf32>
    %18 = vector.shape_cast %17 : vector<1x1x32xf32> to vector<1x32xf32>
    %19 = vector.broadcast %18 : vector<1x32xf32> to vector<8x32xf32>
    %20 = arith.addf %16, %19 : vector<8x32xf32>
    %c2 = arith.constant 2 : index
    %c0_15 = arith.constant 0 : index
    %c0_16 = arith.constant 0 : index
    %21 = vector.load %arg2[%c2, %c0_15, %c0_16] : memref<3x32x32xf32, #tpu.memory_space<vmem>>, vector<1x32x32xf32>
    %22 = vector.shape_cast %21 : vector<1x32x32xf32> to vector<32x32xf32>
    %23 = arith.truncf %22 : vector<32x32xf32> to vector<32x32xbf16>
    %cst_17 = arith.constant dense<0.000000e+00> : vector<8x32xf32>
    %24 = tpu.matmul %2, %23, %cst_17 {dimension_numbers = #tpu.dot_dimension_numbers<[1], [0], [0], [1], [0, 0, 1, 1], [], []>} : vector<8x32xbf16>, vector<32x32xbf16>, vector<8x32xf32> -> vector<8x32xf32>
    %c2_18 = arith.constant 2 : index
    %c0_19 = arith.constant 0 : index
    %c0_20 = arith.constant 0 : index
    %25 = vector.load %arg3[%c2_18, %c0_19, %c0_20] : memref<3x1x32xf32, #tpu.memory_space<vmem>>, vector<1x1x32xf32>
    %26 = vector.shape_cast %25 : vector<1x1x32xf32> to vector<1x32xf32>
    %27 = vector.broadcast %26 : vector<1x32xf32> to vector<8x32xf32>
    %28 = arith.addf %24, %27 : vector<8x32xf32>
    %29 = vector.shape_cast %12 : vector<8x32xf32> to vector<8x4x8xf32>
    %30 = tpu.transpose %29, [1, 0, 2] : vector<8x4x8xf32> -> vector<4x8x8xf32>
    %31 = arith.truncf %30 : vector<4x8x8xf32> to vector<4x8x8xbf16>
    %32 = vector.shape_cast %20 : vector<8x32xf32> to vector<8x4x8xf32>
    %33 = tpu.transpose %32, [1, 0, 2] : vector<8x4x8xf32> -> vector<4x8x8xf32>
    %34 = arith.truncf %33 : vector<4x8x8xf32> to vector<4x8x8xbf16>
    %35 = vector.shape_cast %28 : vector<8x32xf32> to vector<8x4x8xf32>
    %36 = tpu.transpose %35, [1, 0, 2] : vector<8x4x8xf32> -> vector<4x8x8xf32>
    %37 = arith.truncf %36 : vector<4x8x8xf32> to vector<4x8x8xbf16>
    "tpu.trace_start"() <{level = 10 : i32, message = "htd,hsd->hts"}> : () -> ()
    %cst_21 = arith.constant dense<0.000000e+00> : vector<4x8x8xf32>
    %38 = tpu.matmul %31, %34, %cst_21 {dimension_numbers = #tpu.dot_dimension_numbers<[2], [2], [1], [1], [0, 0, 0, 1, 1, 1], [0], [0]>} : vector<4x8x8xbf16>, vector<4x8x8xbf16>, vector<4x8x8xf32> -> vector<4x8x8xf32>
    "tpu.trace_stop"() : () -> ()
    %39 = tpu.iota {dimensions = array<i32: 0>} : vector<8x8xi32>
    %40 = tpu.iota {dimensions = array<i32: 1>} : vector<8x8xi32>
    %41 = arith.cmpi sle, %40, %39 : vector<8x8xi32>
    %42 = vector.shape_cast %41 : vector<8x8xi1> to vector<1x8x8xi1>
    %cst_22 = arith.constant -1.000000e+30 : f32
    %43 = vector.shape_cast %42 : vector<1x8x8xi1> to vector<1x8x8xi1>
    %44 = vector.broadcast %43 : vector<1x8x8xi1> to vector<4x8x8xi1>
    %45 = vector.broadcast %cst_22 : f32 to vector<4x8x8xf32>
    %46 = arith.select %44, %38, %45 : vector<4x8x8xi1>, vector<4x8x8xf32>
    %cst_23 = arith.constant dense<0xFF800000> : vector<4x8xf32>
    %47 = vector.multi_reduction <maximumf>, %46, %cst_23 [2] : vector<4x8x8xf32> to vector<4x8xf32>
    %48 = vector.shape_cast %47 : vector<4x8xf32> to vector<4x8x1xf32>
    %49 = vector.broadcast %48 : vector<4x8x1xf32> to vector<4x8x8xf32>
    %50 = arith.subf %46, %49 : vector<4x8x8xf32>
    %51 = math.exp %50 : vector<4x8x8xf32>
    %cst_24 = arith.constant dense<0.000000e+00> : vector<4x8xf32>
    %52 = vector.multi_reduction <add>, %51, %cst_24 [2] : vector<4x8x8xf32> to vector<4x8xf32>
    %53 = vector.shape_cast %52 : vector<4x8xf32> to vector<4x8x1xf32>
    %54 = arith.truncf %51 : vector<4x8x8xf32> to vector<4x8x8xbf16>
    "tpu.trace_start"() <{level = 10 : i32, message = "hts,hsd->htd"}> : () -> ()
    %cst_25 = arith.constant dense<0.000000e+00> : vector<4x8x8xf32>
    %55 = tpu.matmul %54, %37, %cst_25 {dimension_numbers = #tpu.dot_dimension_numbers<[2], [1], [1], [2], [0, 0, 0, 1, 1, 2], [0], [0]>} : vector<4x8x8xbf16>, vector<4x8x8xbf16>, vector<4x8x8xf32> -> vector<4x8x8xf32>
    "tpu.trace_stop"() : () -> ()
    %56 = tpu.reciprocal %53 {approx = true} : vector<4x8x1xf32> -> vector<4x8x1xf32>
    %57 = vector.broadcast %56 : vector<4x8x1xf32> to vector<4x8x8xf32>
    %58 = arith.mulf %55, %57 : vector<4x8x8xf32>
    %59 = tpu.transpose %58, [1, 0, 2] : vector<4x8x8xf32> -> vector<8x4x8xf32>
    %60 = vector.shape_cast %59 : vector<8x4x8xf32> to vector<8x32xf32>
    %61 = arith.truncf %60 : vector<8x32xf32> to vector<8x32xbf16>
    %c0_26 = arith.constant 0 : index
    %c0_27 = arith.constant 0 : index
    %62 = vector.load %arg4[%c0_26, %c0_27] : memref<32x32xf32, #tpu.memory_space<vmem>>, vector<32x32xf32>
    %63 = arith.truncf %62 : vector<32x32xf32> to vector<32x32xbf16>
    %cst_28 = arith.constant dense<0.000000e+00> : vector<8x32xf32>
    %64 = tpu.matmul %61, %63, %cst_28 {dimension_numbers = #tpu.dot_dimension_numbers<[1], [0], [0], [1], [0, 0, 1, 1], [], []>} : vector<8x32xbf16>, vector<32x32xbf16>, vector<8x32xf32> -> vector<8x32xf32>
    %c0_29 = arith.constant 0 : index
    %c0_30 = arith.constant 0 : index
    %65 = vector.load %arg5[%c0_29, %c0_30] : memref<1x32xf32, #tpu.memory_space<vmem>>, vector<1x32xf32>
    %66 = vector.broadcast %65 : vector<1x32xf32> to vector<8x32xf32>
    %67 = arith.addf %64, %66 : vector<8x32xf32>
    %c0_31 = arith.constant 0 : index
    %c0_32 = arith.constant 0 : index
    %c0_33 = arith.constant 0 : index
    %68 = vector.load %arg6[%c0_31, %c0_32, %c0_33] : memref<1x8x32xf32, #tpu.memory_space<vmem>>, vector<1x8x32xf32>
    %69 = vector.shape_cast %68 : vector<1x8x32xf32> to vector<8x32xf32>
    %70 = vector.shape_cast %67 : vector<8x32xf32> to vector<1x8x32xf32>
    tpu.vector_store %arg6[%c0_31, %c0_32, %c0_33], %70 {strides = array<i32>} : memref<1x8x32xf32, #tpu.memory_space<vmem>>, vector<1x8x32xf32>,
    return
  }
  func.func @transform_0(%arg0: i32) -> (i32, i32, i32) {
    %c0_i32 = arith.constant 0 : i32
    %c0_i32_0 = arith.constant 0 : i32
    %c0_i32_1 = arith.constant 0 : i32
    return %arg0, %c0_i32, %c0_i32_0 : i32, i32, i32
  }
  func.func @transform_1(%arg0: i32) -> (i32, i32, i32) {
    %c0_i32 = arith.constant 0 : i32
    %c0_i32_0 = arith.constant 0 : i32
    %c0_i32_1 = arith.constant 0 : i32
    %c0_i32_2 = arith.constant 0 : i32
    return %c0_i32, %c0_i32_0, %c0_i32_1 : i32, i32, i32
  }
  func.func @transform_2(%arg0: i32) -> (i32, i32, i32) {
    %c0_i32 = arith.constant 0 : i32
    %c0_i32_0 = arith.constant 0 : i32
    %c0_i32_1 = arith.constant 0 : i32
    %c0_i32_2 = arith.constant 0 : i32
    return %c0_i32, %c0_i32_0, %c0_i32_1 : i32, i32, i32
  }
  func.func @transform_3(%arg0: i32) -> (i32, i32) {
    %c0_i32 = arith.constant 0 : i32
    %c0_i32_0 = arith.constant 0 : i32
    %c0_i32_1 = arith.constant 0 : i32
    return %c0_i32, %c0_i32_0 : i32, i32
  }
  func.func @transform_4(%arg0: i32) -> (i32, i32) {
    %c0_i32 = arith.constant 0 : i32
    %c0_i32_0 = arith.constant 0 : i32
    %c0_i32_1 = arith.constant 0 : i32
    return %c0_i32, %c0_i32_0 : i32, i32
  }
  func.func @transform_5(%arg0: i32) -> (i32, i32, i32) {
    %c0_i32 = arith.constant 0 : i32
    %c0_i32_0 = arith.constant 0 : i32
    %c0_i32_1 = arith.constant 0 : i32
    return %arg0, %c0_i32, %c0_i32_0 : i32, i32, i32
  }
}

</mosaic_0001>

<llo_original>
// kernel: tpu_custom_call.1
$region0: #{tpu_custom_call.1}
  #allocation0 [shape = 'u32[]', space=smem, size = 0x4, offset = 0x4, fixed_abs, tag = 'smem constant byte address 0x4 - core index']
  #allocation1 [shape = 'u32[144,128]{1,0:T(1,128)}', space=vmem, size = 0x12000, scoped, tag = 'internal scratch']
  %s0 = inlined_call_operand.hbm [shape: f32[2,8,32], index: 0, kind: input, shape index: {}]
  %s1 = inlined_call_operand.hbm [shape: f32[3,32,32], index: 1, kind: input, shape index: {}]
  %s2 = inlined_call_operand.vmem [shape: f32[3,1,32], index: 2, kind: input, shape index: {}]
  %s3 = inlined_call_operand.hbm [shape: f32[32,32], index: 3, kind: input, shape index: {}]
  %s4 = inlined_call_operand.vmem [shape: f32[1,32], index: 4, kind: input, shape index: {}]
  %s5 = inlined_call_operand.hbm [shape: f32[2,8,32], index: 5, kind: output, shape index: {}]
  %s6 = sld [smem:[#allocation0]]
  $region65: #{tpu_custom_call.1} parent=0
    _
  %s8 = ssub.s32 1, %s6
  %s9 = scalar_select 0, %s8, %s6
  $region1: #{tpu_custom_call.1} parent=0
    #allocation2 [shape = 'u8[8192]{0}', space=vmem, size = 0x2000, scoped, tag = 'input window, operand 0']
    #allocation3 [shape = 's32[2]{0}', space=sflag, size = 0x8, scoped, tag = 'scoped memory for tpu_custom_call.1']
    #allocation4 [shape = 's32[2]{0}', space=sflag, size = 0x8, scoped, tag = 'scoped memory for tpu_custom_call.1']
    #allocation5 [shape = 'u8[49152]{0}', space=vmem, size = 0xc000, scoped, tag = 'input window, operand 1, single buffered']
    #allocation6 [shape = 's32[1]{0}', space=sflag, size = 0x4, scoped, tag = 'scoped memory for tpu_custom_call.1']
    #allocation7 [shape = 'u8[16384]{0}', space=vmem, size = 0x4000, scoped, tag = 'input window, operand 3, single buffered']
    #allocation8 [shape = 'u8[8192]{0}', space=vmem, size = 0x2000, scoped, tag = 'output window, operand 0']
    %10 = vsyncpa [#allocation3], 0
    %s11 = scalar_lea.sflag [#allocation3], 1
    %12 = vsyncpa %s11, 0
    %13 = vsyncpa [#allocation6], 0
    %14 = vsyncpa [#allocation4], 0
    %s15 = scalar_lea.sflag [#allocation4], 1
    %16 = vsyncpa %s15, 0
    loop: start=0, step=1, limit=4
    $region2: #{tpu_custom_call.1} parent=1 // loop_pre_header
      _
    $region3: #{tpu_custom_call.1} parent=1 // loop_header
      %s18 = sphi 0, %s22
      %p19 = scmp.ge.s32.totalorder %s18, 4
      %s28 = sphi 0, %s30
      %s31 = sphi 0, %s28
      %s32 = sphi 0, %s31
      %s48 = sphi 0, %s32
      %s52 = sphi 0, %s52
      %s54 = sphi 0, %s52
      %s55 = sphi 0, %s54
      %s69 = sphi 0, %s55
      %s73 = sphi 0, %s73
      %s75 = sphi 0, %s73
      %s76 = sphi 0, %s75
      %s90 = sphi 0, %s76
      %s94 = sphi 0, %s94
      %s96 = sphi 0, %s94
      %s97 = sphi 0, %s96
      %s111 = sphi 0, %s97
      %s115 = sphi 0, %s115
      %s117 = sphi 0, %s115
      %s118 = sphi 0, %s117
      %s132 = sphi 0, %s118
      %s138 = sphi 0, %s140
      %s141 = sphi 0, %s138
      %s142 = sphi 0, %s141
      %s158 = sphi 0, %s142
    $region4: #{tpu_custom_call.1} parent=1 // loop_header_branch
      %21 = sbr.rel (%p19) target = $region8
    $region5: #{tpu_custom_call.1} parent=1 // loop_body
      %s23 = ssub.s32 %s18, 1
      %s24 = ssub.s32 %s18, 2
      %s25 = sadd.s32 %s18, 1
      %s26 = ssub.s32 %s18, %s25
      %p27 = scmp.eq.s32.totalorder %s26, 0
      %s29 = sadd.s32 %s28, 1
      %s30 = scalar_select %p27, %s28, %s29
      %p33 = pneg %p27
      %p34 = scmp.eq.s32.totalorder %s18, 1
      %p35 = por %p33, %p34
      %p36 = scmp.ne.s32.totalorder %s28, %s31
      %p37 = scmp.eq.s32.totalorder %s18, 0
      %p38 = por %p36, %p37
      %p39 = scmp.ne.s32.totalorder %s28, %s31
      %p40 = scmp.eq.s32.totalorder %s23, 1
      %p41 = por %p39, %p40
      %p42 = scmp.ne.s32.totalorder %s31, %s32
      %p43 = scmp.eq.s32.totalorder %s23, 0
      %p44 = por %p42, %p43
      %p45 = scmp.ne.s32.totalorder %s31, %s32
      %p46 = scmp.eq.s32.totalorder %s24, 1
      %p47 = por %p45, %p46
      %p49 = scmp.ne.s32.totalorder %s32, %s48
      %p50 = scmp.eq.s32.totalorder %s24, 0
      %p51 = por %p49, %p50
      %s53 = sadd.s32 %s52, 1
      %p56 = scmp.eq.s32.totalorder %s18, 1
      %p57 = scmp.ne.s32.totalorder %s52, %s54
      %p58 = scmp.eq.s32.totalorder %s18, 0
      %p59 = por %p57, %p58
      %p60 = scmp.ne.s32.totalorder %s52, %s54
      %p61 = scmp.eq.s32.totalorder %s23, 1
      %p62 = por %p60, %p61
      %p63 = scmp.ne.s32.totalorder %s54, %s55
      %p64 = scmp.eq.s32.totalorder %s23, 0
      %p65 = por %p63, %p64
      %p66 = scmp.ne.s32.totalorder %s54, %s55
      %p67 = scmp.eq.s32.totalorder %s24, 1
      %p68 = por %p66, %p67
      %p70 = scmp.ne.s32.totalorder %s55, %s69
      %p71 = scmp.eq.s32.totalorder %s24, 0
      %p72 = por %p70, %p71
      %s74 = sadd.s32 %s73, 1
      %p77 = scmp.eq.s32.totalorder %s18, 1
      %p78 = scmp.ne.s32.totalorder %s73, %s75
      %p79 = scmp.eq.s32.totalorder %s18, 0
      %p80 = por %p78, %p79
      %p81 = scmp.ne.s32.totalorder %s73, %s75
      %p82 = scmp.eq.s32.totalorder %s23, 1
      %p83 = por %p81, %p82
      %p84 = scmp.ne.s32.totalorder %s75, %s76
      %p85 = scmp.eq.s32.totalorder %s23, 0
      %p86 = por %p84, %p85
      %p87 = scmp.ne.s32.totalorder %s75, %s76
      %p88 = scmp.eq.s32.totalorder %s24, 1
      %p89 = por %p87, %p88
      %p91 = scmp.ne.s32.totalorder %s76, %s90
      %p92 = scmp.eq.s32.totalorder %s24, 0
      %p93 = por %p91, %p92
      %s95 = sadd.s32 %s94, 1
      %p98 = scmp.eq.s32.totalorder %s18, 1
      %p99 = scmp.ne.s32.totalorder %s94, %s96
      %p100 = scmp.eq.s32.totalorder %s18, 0
      %p101 = por %p99, %p100
      %p102 = scmp.ne.s32.totalorder %s94, %s96
      %p103 = scmp.eq.s32.totalorder %s23, 1
      %p104 = por %p102, %p103
      %p105 = scmp.ne.s32.totalorder %s96, %s97
      %p106 = scmp.eq.s32.totalorder %s23, 0
      %p107 = por %p105, %p106
      %p108 = scmp.ne.s32.totalorder %s96, %s97
      %p109 = scmp.eq.s32.totalorder %s24, 1
      %p110 = por %p108, %p109
      %p112 = scmp.ne.s32.totalorder %s97, %s111
      %p113 = scmp.eq.s32.totalorder %s24, 0
      %p114 = por %p112, %p113
      %s116 = sadd.s32 %s115, 1
      %p119 = scmp.eq.s32.totalorder %s18, 1
      %p120 = scmp.ne.s32.totalorder %s115, %s117
      %p121 = scmp.eq.s32.totalorder %s18, 0
      %p122 = por %p120, %p121
      %p123 = scmp.ne.s32.totalorder %s115, %s117
      %p124 = scmp.eq.s32.totalorder %s23, 1
      %p125 = por %p123, %p124
      %p126 = scmp.ne.s32.totalorder %s117, %s118
      %p127 = scmp.eq.s32.totalorder %s23, 0
      %p128 = por %p126, %p127
      %p129 = scmp.ne.s32.totalorder %s117, %s118
      %p130 = scmp.eq.s32.totalorder %s24, 1
      %p131 = por %p129, %p130
      %p133 = scmp.ne.s32.totalorder %s118, %s132
      %p134 = scmp.eq.s32.totalorder %s24, 0
      %p135 = por %p133, %p134
      %s136 = ssub.s32 %s18, %s25
      %p137 = scmp.eq.s32.totalorder %s136, 0
      %s139 = sadd.s32 %s138, 1
      %s140 = scalar_select %p137, %s138, %s139
      %p143 = pneg %p137
      %p144 = scmp.eq.s32.totalorder %s18, 1
      %p145 = por %p143, %p144
      %p146 = scmp.ne.s32.totalorder %s138, %s141
      %p147 = scmp.eq.s32.totalorder %s18, 0
      %p148 = por %p146, %p147
      %p149 = scmp.ne.s32.totalorder %s138, %s141
      %p150 = scmp.eq.s32.totalorder %s23, 1
      %p151 = por %p149, %p150
      %p152 = scmp.ne.s32.totalorder %s141, %s142
      %p153 = scmp.eq.s32.totalorder %s23, 0
      %p154 = por %p152, %p153
      %p155 = scmp.ne.s32.totalorder %s141, %s142
      %p156 = scmp.eq.s32.totalorder %s24, 1
      %p157 = por %p155, %p156
      %p159 = scmp.ne.s32.totalorder %s142, %s158
      %p160 = scmp.eq.s32.totalorder %s24, 0
      %p161 = por %p159, %p160
      %p162 = scmp.le.s32.totalorder 1, %s18
      %p163 = scmp.lt.s32.totalorder %s18, 3
      %p164 = pnand %p162, %p163
      %p165 = pneg %p164
      // Predicated region
      $region9: #{tpu_custom_call.1} parent=5 // pred_check
        _
      $region10: #{tpu_custom_call.1} parent=5 // pred_check_branch
        %167 = sbr.rel (%p164) target = $region12
      $region11: #{tpu_custom_call.1} parent=5 // pred_region
        %s168 = ssub.s32 %s18, 1
        // Predicated region
        $region13: #{tpu_custom_call.1} parent=11 // pred_check
          %p169 = pneg %p65
        $region14: #{tpu_custom_call.1} parent=11 // pred_check_branch
          %171 = sbr.rel (%p169) target = $region16
        $region15: #{tpu_custom_call.1} parent=11 // pred_region
          %s173 = ssub.s32 1536, 1536
          %174 = vsyncadd [#allocation6], %s173
          %s175 = sshll.u32 [#allocation5], 4
          %s176 = int_to_ptr.vmem [resolvable:$true] %s175
          %181 = dma.hbm_to_vmem [thread:$0]  %s1, 1536, %s176, [#allocation6], 128, 128, 8
        $region16: #{tpu_custom_call.1} parent=11 // pred_fallthru
          _
        // Predicated region
        $region17: #{tpu_custom_call.1} parent=11 // pred_check
          %p182 = pneg %p86
        $region18: #{tpu_custom_call.1} parent=11 // pred_check_branch
          %184 = sbr.rel (%p182) target = $region20
        $region19: #{tpu_custom_call.1} parent=11 // pred_region
          _
        $region20: #{tpu_custom_call.1} parent=11 // pred_fallthru
          _
        // Predicated region
        $region21: #{tpu_custom_call.1} parent=11 // pred_check
          %p185 = pneg %p107
        $region22: #{tpu_custom_call.1} parent=11 // pred_check_branch
          %187 = sbr.rel (%p185) target = $region24
        $region23: #{tpu_custom_call.1} parent=11 // pred_region
          %s189 = ssub.s32 512, 512
          %190 = vsyncadd [#allocation6], %s189
          %s191 = sshll.u32 [#allocation7], 4
          %s192 = int_to_ptr.vmem [resolvable:$true] %s191
          %197 = dma.hbm_to_vmem [thread:$0]  %s3, 512, %s192, [#allocation6], 128, 128, 8
        $region24: #{tpu_custom_call.1} parent=11 // pred_fallthru
          _
        // Predicated region
        $region25: #{tpu_custom_call.1} parent=11 // pred_check
          %p198 = pneg %p128
        $region26: #{tpu_custom_call.1} parent=11 // pred_check_branch
          %200 = sbr.rel (%p198) target = $region28
        $region27: #{tpu_custom_call.1} parent=11 // pred_region
          _
        $region28: #{tpu_custom_call.1} parent=11 // pred_fallthru
          _
      $region12: #{tpu_custom_call.1} parent=5 // pred_fallthru
        _
      %p201 = scmp.lt.s32.totalorder %s18, 2
      // Predicated region
      $region29: #{tpu_custom_call.1} parent=5 // pred_check
        %p202 = pneg %p201
      $region30: #{tpu_custom_call.1} parent=5 // pred_check_branch
        %204 = sbr.rel (%p202) target = $region32
      $region31: #{tpu_custom_call.1} parent=5 // pred_region
        // Predicated region
        $region33: #{tpu_custom_call.1} parent=31 // pred_check
          %p205 = pneg %p38
        $region34: #{tpu_custom_call.1} parent=31 // pred_check_branch
          %207 = sbr.rel (%p205) target = $region36
        $region35: #{tpu_custom_call.1} parent=31 // pred_region
          %s208 = sand.u32 %s28, 1
          %s209 = scalar_lea.sflag [#allocation3], %s208
          %s210 = sand.u32 %s28, 1
          %s211 = smul.addr %s210, 8
          %s212 = scalar_lea.vmem [#allocation2], %s211
          %s214 = ssub.s32 128, 128
          %215 = vsyncadd %s209, %s214
          %s216 = smul.addr %s18, 128
          %s217 = scalar_lea.hbm %s0, %s216
          %s219 = sshll.u32 %s212, 4
          %s220 = int_to_ptr.vmem [resolvable:$true] %s219
          %222 = dma.hbm_to_vmem [thread:$0]  %s217, 128, %s220, %s209
        $region36: #{tpu_custom_call.1} parent=31 // pred_fallthru
          _
      $region32: #{tpu_custom_call.1} parent=5 // pred_fallthru
        _
      %p223 = scmp.le.s32.totalorder 1, %s18
      %p224 = scmp.lt.s32.totalorder %s18, 3
      %p225 = pnand %p223, %p224
      %p226 = pneg %p225
      // Predicated region
      $region37: #{tpu_custom_call.1} parent=5 // pred_check
        _
      $region38: #{tpu_custom_call.1} parent=5 // pred_check_branch
        %228 = sbr.rel (%p225) target = $region40
      $region39: #{tpu_custom_call.1} parent=5 // pred_region
        %s229 = ssub.s32 %s18, 1
        %s230 = sand.u32 %s31, 1
        %s231 = scalar_lea.sflag [#allocation3], %s230
        %s232 = sand.u32 %s31, 1
        %s233 = smul.addr %s232, 8
        %s234 = scalar_lea.vmem [#allocation2], %s233
        // Predicated region
        $region41: #{tpu_custom_call.1} parent=39 // pred_check
          %p235 = pneg %p44
        $region42: #{tpu_custom_call.1} parent=39 // pred_check_branch
          %237 = sbr.rel (%p235) target = $region44
        $region43: #{tpu_custom_call.1} parent=39 // pred_region
          %238 = dma.done %s231, 128
        $region44: #{tpu_custom_call.1} parent=39 // pred_fallthru
          _
        // Predicated region
        $region45: #{tpu_custom_call.1} parent=39 // pred_check
          %p239 = pneg %p65
        $region46: #{tpu_custom_call.1} parent=39 // pred_check_branch
          %241 = sbr.rel (%p239) target = $region48
        $region47: #{tpu_custom_call.1} parent=39 // pred_region
          %242 = dma.done [#allocation6], 1536
        $region48: #{tpu_custom_call.1} parent=39 // pred_fallthru
          _
        // Predicated region
        $region49: #{tpu_custom_call.1} parent=39 // pred_check
          %p243 = pneg %p107
        $region50: #{tpu_custom_call.1} parent=39 // pred_check_branch
          %245 = sbr.rel (%p243) target = $region52
        $region51: #{tpu_custom_call.1} parent=39 // pred_region
          %246 = dma.done [#allocation6], 512
        $region52: #{tpu_custom_call.1} parent=39 // pred_fallthru
          _
        %s247 = sand.u32 %s31, 1
        %s248 = scalar_lea.sflag [#allocation3], %s247
        %s249 = sand.u32 %s31, 1
        %s250 = smul.addr %s249, 8
        %s251 = scalar_lea.vmem [#allocation2], %s250
        %p252 = pneg %p44
        %p253 = pneg %p41
        %p254 = pneg %p65
        %p255 = pneg %p62
        %p256 = pneg %p86
        %p257 = pneg %p83
        %p258 = pneg %p107
        %p259 = pneg %p104
        %p260 = pneg %p128
        %p261 = pneg %p125
        %p262 = pneg %p154
        %p263 = pneg %p151
        %s264 = sand.u32 %s141, 1
        %s265 = scalar_lea.sflag [#allocation4], %s264
        %s266 = sand.u32 %s141, 1
        %s267 = smul.addr %s266, 8
        %s268 = scalar_lea.vmem [#allocation8], %s267
        %v270 = vld [vmem:[%s234] sm:$0xff]
        %v271 = vpack.c.bf16 %v270, %v270
        %v272 = vld [vmem:[#allocation5] sm:$0xff]
        %v273 = vld [vmem:[#allocation5 + $0x8] sm:$0xff]
        %v274 = vld [vmem:[#allocation5 + $0x10] sm:$0xff]
        %v275 = vld [vmem:[#allocation5 + $0x18] sm:$0xff]
        %v276 = vpack.c.bf16 %v273, %v272
        %v277 = vpack.c.bf16 %v275, %v274
        %v278 = vld [vmem:[%s2] sm:$0x1]
        %v280 = vlaneseq
        %v281 = vshrl.u32 %v280, 7
        %v282 = vsub.s32 0, %v281
        %v283 = vrot.slane %v278, %v282
        %vm285 = vcmask 261120
        %v287 = vsel %vm285, %v271, 0
        %289 = vmatprep.subr.bf16.mxu0 0
        %290 = vmatpush1.bf16.msra.mxu0 %v276
        %291 = vmatprep.subr.bf16.mxu0 0
        %292 = vmatpush1.bf16.msra.mxu0 %v277
        %293 = vmatprep.subr.bf16.mxu0 0
        %294 = vmatpush1.bf16.msra.mxu0 0
        %295 = vmatprep.subr.bf16.mxu0 0
        %296 = vmatpush1.bf16.msra.mxu0 0
        %297 = vmatprep.subr.bf16.mxu0 0
        %298 = vmatpush1.bf16.msra.mxu0 0
        %299 = vmatprep.subr.bf16.mxu0 0
        %300 = vmatpush1.bf16.msra.mxu0 0
        %301 = vmatprep.subr.bf16.mxu0 0
        %302 = vmatpush1.bf16.msra.mxu0 0
        %303 = vmatprep.subr.bf16.mxu0 0
        %304 = vmatpush1.bf16.msra.mxu0 0
        %305 = vmatprep.subr.bf16.mxu0 0
        %306 = vmatpush1.bf16.msra.mxu0 0
        %307 = vmatprep.subr.bf16.mxu0 0
        %308 = vmatpush1.bf16.msra.mxu0 0
        %309 = vmatprep.subr.bf16.mxu0 0
        %310 = vmatpush1.bf16.msra.mxu0 0
        %311 = vmatprep.subr.bf16.mxu0 0
        %312 = vmatpush1.bf16.msra.mxu0 0
        %313 = vmatprep.subr.bf16.mxu0 0
        %314 = vmatpush1.bf16.msra.mxu0 0
        %315 = vmatprep.subr.bf16.mxu0 0
        %316 = vmatpush1.bf16.msra.mxu0 0
        %317 = vmatprep.subr.bf16.mxu0 0
        %318 = vmatpush1.bf16.msra.mxu0 0
        %319 = vmatprep.subr.bf16.mxu0 0
        %320 = vmatpush1.bf16.msra.mxu0 0
        %321 = vmatprep.mubr.bf16.mxu0 0
        %322 = vmatmul.mubr.bf16.gmra.mrb[0].mxu0 %v287
        %v323 = vpop.f32.mrb[0].mxu0
        %v324 = vadd.f32 %v283, %v323
        %v325 = vpop.f32.mrb[0].mxu0
        %v326 = vpop.f32.mrb[0].mxu0
        %v327 = vpop.f32.mrb[0].mxu0
        %328 = vdwg.mxu0
        %v329 = vmul.f32 %v324, 0.35355338
        %s330 = scalar_lea.vmem [#allocation5], 32
        %v331 = vld [vmem:[%s330] sm:$0xff]
        %v332 = vld [vmem:[%s330 + $0x8] sm:$0xff]
        %v333 = vld [vmem:[%s330 + $0x10] sm:$0xff]
        %v334 = vld [vmem:[%s330 + $0x18] sm:$0xff]
        %v335 = vpack.c.bf16 %v332, %v331
        %v336 = vpack.c.bf16 %v334, %v333
        %s337 = scalar_lea.vmem %s2, 1
        %v338 = vld [vmem:[%s337] sm:$0x1]
        %v340 = vlaneseq
        %v341 = vshrl.u32 %v340, 7
        %v342 = vsub.s32 0, %v341
        %v343 = vrot.slane %v338, %v342
        %345 = vmatprep.subr.bf16.mxu0 0
        %346 = vmatpush1.bf16.msra.mxu0 %v335
        %347 = vmatprep.subr.bf16.mxu0 0
        %348 = vmatpush1.bf16.msra.mxu0 %v336
        %349 = vmatprep.subr.bf16.mxu0 0
        %350 = vmatpush1.bf16.msra.mxu0 0
        %351 = vmatprep.subr.bf16.mxu0 0
        %352 = vmatpush1.bf16.msra.mxu0 0
        %353 = vmatprep.subr.bf16.mxu0 0
        %354 = vmatpush1.bf16.msra.mxu0 0
        %355 = vmatprep.subr.bf16.mxu0 0
        %356 = vmatpush1.bf16.msra.mxu0 0
        %357 = vmatprep.subr.bf16.mxu0 0
        %358 = vmatpush1.bf16.msra.mxu0 0
        %359 = vmatprep.subr.bf16.mxu0 0
        %360 = vmatpush1.bf16.msra.mxu0 0
        %361 = vmatprep.subr.bf16.mxu0 0
        %362 = vmatpush1.bf16.msra.mxu0 0
        %363 = vmatprep.subr.bf16.mxu0 0
        %364 = vmatpush1.bf16.msra.mxu0 0
        %365 = vmatprep.subr.bf16.mxu0 0
        %366 = vmatpush1.bf16.msra.mxu0 0
        %367 = vmatprep.subr.bf16.mxu0 0
        %368 = vmatpush1.bf16.msra.mxu0 0
        %369 = vmatprep.subr.bf16.mxu0 0
        %370 = vmatpush1.bf16.msra.mxu0 0
        %371 = vmatprep.subr.bf16.mxu0 0
        %372 = vmatpush1.bf16.msra.mxu0 0
        %373 = vmatprep.subr.bf16.mxu0 0
        %374 = vmatpush1.bf16.msra.mxu0 0
        %375 = vmatprep.subr.bf16.mxu0 0
        %376 = vmatpush1.bf16.msra.mxu0 0
        %377 = vmatprep.mubr.bf16.mxu0 0
        %378 = vmatmul.mubr.bf16.gmra.mrb[0].mxu0 %v287
        %v379 = vpop.f32.mrb[0].mxu0
        %v380 = vadd.f32 %v343, %v379
        %v381 = vpop.f32.mrb[0].mxu0
        %v382 = vpop.f32.mrb[0].mxu0
        %v383 = vpop.f32.mrb[0].mxu0
        %384 = vdwg.mxu0
        %s385 = scalar_lea.vmem [#allocation5], 64
        %v386 = vld [vmem:[%s385] sm:$0xff]
        %v387 = vld [vmem:[%s385 + $0x8] sm:$0xff]
        %v388 = vld [vmem:[%s385 + $0x10] sm:$0xff]
        %v389 = vld [vmem:[%s385 + $0x18] sm:$0xff]
        %v390 = vpack.c.bf16 %v387, %v386
        %v391 = vpack.c.bf16 %v389, %v388
        %s392 = scalar_lea.vmem %s2, 2
        %v393 = vld [vmem:[%s392] sm:$0x1]
        %v395 = vlaneseq
        %v396 = vshrl.u32 %v395, 7
        %v397 = vsub.s32 0, %v396
        %v398 = vrot.slane %v393, %v397
        %400 = vmatprep.subr.bf16.mxu0 0
        %401 = vmatpush1.bf16.msra.mxu0 %v390
        %402 = vmatprep.subr.bf16.mxu0 0
        %403 = vmatpush1.bf16.msra.mxu0 %v391
        %404 = vmatprep.subr.bf16.mxu0 0
        %405 = vmatpush1.bf16.msra.mxu0 0
        %406 = vmatprep.subr.bf16.mxu0 0
        %407 = vmatpush1.bf16.msra.mxu0 0
        %408 = vmatprep.subr.bf16.mxu0 0
        %409 = vmatpush1.bf16.msra.mxu0 0
        %410 = vmatprep.subr.bf16.mxu0 0
        %411 = vmatpush1.bf16.msra.mxu0 0
        %412 = vmatprep.subr.bf16.mxu0 0
        %413 = vmatpush1.bf16.msra.mxu0 0
        %414 = vmatprep.subr.bf16.mxu0 0
        %415 = vmatpush1.bf16.msra.mxu0 0
        %416 = vmatprep.subr.bf16.mxu0 0
        %417 = vmatpush1.bf16.msra.mxu0 0
        %418 = vmatprep.subr.bf16.mxu0 0
        %419 = vmatpush1.bf16.msra.mxu0 0
        %420 = vmatprep.subr.bf16.mxu0 0
        %421 = vmatpush1.bf16.msra.mxu0 0
        %422 = vmatprep.subr.bf16.mxu0 0
        %423 = vmatpush1.bf16.msra.mxu0 0
        %424 = vmatprep.subr.bf16.mxu0 0
        %425 = vmatpush1.bf16.msra.mxu0 0
        %426 = vmatprep.subr.bf16.mxu0 0
        %427 = vmatpush1.bf16.msra.mxu0 0
        %428 = vmatprep.subr.bf16.mxu0 0
        %429 = vmatpush1.bf16.msra.mxu0 0
        %430 = vmatprep.subr.bf16.mxu0 0
        %431 = vmatpush1.bf16.msra.mxu0 0
        %432 = vmatprep.mubr.bf16.mxu0 0
        %433 = vmatmul.mubr.bf16.gmra.mrb[0].mxu0 %v287
        %v434 = vpop.f32.mrb[0].mxu0
        %v435 = vadd.f32 %v398, %v434
        %v436 = vpop.f32.mrb[0].mxu0
        %v437 = vpop.f32.mrb[0].mxu0
        %v438 = vpop.f32.mrb[0].mxu0
        %439 = vdwg.mxu0
        %441 = vrot.lane.b32.xlu0 %v329, 120
        %v442 = vpop.permute.xlu0 %441
        %444 = vrot.lane.b32.xlu0 %v329, 112
        %v445 = vpop.permute.xlu0 %444
        %447 = vrot.lane.b32.xlu0 %v329, 104
        %v448 = vpop.permute.xlu0 %447
        %v450 = vcombine.low %v329, %v445
        %v451 = vcombine.high %v329, %v445
        %v453 = vunpack.c.l.s4 1983009808
        %v454 = vunpack.c.0.s8 %v453
        %v455 = vlaneseq
        %v456 = vshrl.u32 %v455, 7
        %v457 = vsub.s32 %v454, %v456
        %v458 = vrot.slane %v450, %v457
        %v460 = vunpack.c.l.s4 1983009808
        %v461 = vunpack.c.0.s8 %v460
        %v462 = vlaneseq
        %v463 = vshrl.u32 %v462, 7
        %v464 = vsub.s32 %v461, %v463
        %v465 = vrot.slane %v451, %v464
        %v466 = vcombine.low %v442, %v448
        %v467 = vcombine.high %v442, %v448
        %v469 = vunpack.c.l.s4 1983009808
        %v470 = vunpack.c.0.s8 %v469
        %v471 = vlaneseq
        %v472 = vshrl.u32 %v471, 7
        %v473 = vsub.s32 %v470, %v472
        %v474 = vrot.slane %v466, %v473
        %v476 = vunpack.c.l.s4 1983009808
        %v477 = vunpack.c.0.s8 %v476
        %v478 = vlaneseq
        %v479 = vshrl.u32 %v478, 7
        %v480 = vsub.s32 %v477, %v479
        %v481 = vrot.slane %v467, %v480
        %v482 = vcombine.low %v458, %v474
        %v483 = vcombine.high %v458, %v474
        %v485 = vunpack.c.l.s4 1934713408
        %v486 = vunpack.c.0.s8 %v485
        %v487 = vlaneseq
        %v488 = vshrl.u32 %v487, 7
        %v489 = vsub.s32 %v486, %v488
        %v490 = vrot.slane %v482, %v489
        %v492 = vunpack.c.l.s4 1934713408
        %v493 = vunpack.c.0.s8 %v492
        %v494 = vlaneseq
        %v495 = vshrl.u32 %v494, 7
        %v496 = vsub.s32 %v493, %v495
        %v497 = vrot.slane %v483, %v496
        %v498 = vcombine.low %v465, %v481
        %v499 = vcombine.high %v465, %v481
        %v501 = vunpack.c.l.s4 1934713408
        %v502 = vunpack.c.0.s8 %v501
        %v503 = vlaneseq
        %v504 = vshrl.u32 %v503, 7
        %v505 = vsub.s32 %v502, %v504
        %v506 = vrot.slane %v498, %v505
        %v508 = vunpack.c.l.s4 1934713408
        %v509 = vunpack.c.0.s8 %v508
        %v510 = vlaneseq
        %v511 = vshrl.u32 %v510, 7
        %v512 = vsub.s32 %v509, %v511
        %v513 = vrot.slane %v499, %v512
        %v514 = vcombine.high %v490, 0.0
        %v515 = vcombine.high %v497, 0.0
        %v516 = vcombine.high %v506, 0.0
        %v517 = vcombine.high %v513, 0.0
        %v518 = vcombine.low %v490, %v497
        %v520 = vunpack.c.l.s4 1983009808
        %v521 = vunpack.c.0.s8 %v520
        %v522 = vlaneseq
        %v523 = vshrl.u32 %v522, 7
        %v524 = vsub.s32 %v521, %v523
        %v525 = vrot.slane %v518, %v524
        %v526 = vcombine.low %v514, %v515
        %v528 = vunpack.c.l.s4 1983009808
        %v529 = vunpack.c.0.s8 %v528
        %v530 = vlaneseq
        %v531 = vshrl.u32 %v530, 7
        %v532 = vsub.s32 %v529, %v531
        %v533 = vrot.slane %v526, %v532
        %v534 = vcombine.low %v506, %v513
        %v536 = vunpack.c.l.s4 1983009808
        %v537 = vunpack.c.0.s8 %v536
        %v538 = vlaneseq
        %v539 = vshrl.u32 %v538, 7
        %v540 = vsub.s32 %v537, %v539
        %v541 = vrot.slane %v534, %v540
        %v542 = vcombine.low %v516, %v517
        %v544 = vunpack.c.l.s4 1983009808
        %v545 = vunpack.c.0.s8 %v544
        %v546 = vlaneseq
        %v547 = vshrl.u32 %v546, 7
        %v548 = vsub.s32 %v545, %v547
        %v549 = vrot.slane %v542, %v548
        %v550 = vcombine.low %v525, %v533
        %v551 = vcombine.high %v525, %v533
        %v553 = vunpack.c.l.s4 1934713408
        %v554 = vunpack.c.0.s8 %v553
        %v555 = vlaneseq
        %v556 = vshrl.u32 %v555, 7
        %v557 = vsub.s32 %v554, %v556
        %v558 = vrot.slane %v550, %v557
        %v560 = vunpack.c.l.s4 1934713408
        %v561 = vunpack.c.0.s8 %v560
        %v562 = vlaneseq
        %v563 = vshrl.u32 %v562, 7
        %v564 = vsub.s32 %v561, %v563
        %v565 = vrot.slane %v551, %v564
        %v566 = vcombine.low %v541, %v549
        %v567 = vcombine.high %v541, %v549
        %v569 = vunpack.c.l.s4 1934713408
        %v570 = vunpack.c.0.s8 %v569
        %v571 = vlaneseq
        %v572 = vshrl.u32 %v571, 7
        %v573 = vsub.s32 %v570, %v572
        %v574 = vrot.slane %v566, %v573
        %v576 = vunpack.c.l.s4 1934713408
        %v577 = vunpack.c.0.s8 %v576
        %v578 = vlaneseq
        %v579 = vshrl.u32 %v578, 7
        %v580 = vsub.s32 %v577, %v579
        %v581 = vrot.slane %v567, %v580
        %v582 = vcombine.low %v558, %v574
        %v583 = vcombine.high %v558, %v574
        %v584 = vcombine.low %v565, %v581
        %v585 = vcombine.high %v565, %v581
        %v586 = vpack.c.bf16 %v582, %v582
        %v587 = vpack.c.bf16 %v583, %v583
        %v588 = vpack.c.bf16 %v584, %v584
        %v589 = vpack.c.bf16 %v585, %v585
        %591 = vrot.lane.b32.xlu0 %v380, 120
        %v592 = vpop.permute.xlu0 %591
        %594 = vrot.lane.b32.xlu0 %v380, 112
        %v595 = vpop.permute.xlu0 %594
        %597 = vrot.lane.b32.xlu0 %v380, 104
        %v598 = vpop.permute.xlu0 %597
        %v600 = vcombine.low %v380, %v595
        %v601 = vcombine.high %v380, %v595
        %v603 = vunpack.c.l.s4 1983009808
        %v604 = vunpack.c.0.s8 %v603
        %v605 = vlaneseq
        %v606 = vshrl.u32 %v605, 7
        %v607 = vsub.s32 %v604, %v606
        %v608 = vrot.slane %v600, %v607
        %v610 = vunpack.c.l.s4 1983009808
        %v611 = vunpack.c.0.s8 %v610
        %v612 = vlaneseq
        %v613 = vshrl.u32 %v612, 7
        %v614 = vsub.s32 %v611, %v613
        %v615 = vrot.slane %v601, %v614
        %v616 = vcombine.low %v592, %v598
        %v617 = vcombine.high %v592, %v598
        %v619 = vunpack.c.l.s4 1983009808
        %v620 = vunpack.c.0.s8 %v619
        %v621 = vlaneseq
        %v622 = vshrl.u32 %v621, 7
        %v623 = vsub.s32 %v620, %v622
        %v624 = vrot.slane %v616, %v623
        %v626 = vunpack.c.l.s4 1983009808
        %v627 = vunpack.c.0.s8 %v626
        %v628 = vlaneseq
        %v629 = vshrl.u32 %v628, 7
        %v630 = vsub.s32 %v627, %v629
        %v631 = vrot.slane %v617, %v630
        %v632 = vcombine.low %v608, %v624
        %v633 = vcombine.high %v608, %v624
        %v635 = vunpack.c.l.s4 1934713408
        %v636 = vunpack.c.0.s8 %v635
        %v637 = vlaneseq
        %v638 = vshrl.u32 %v637, 7
        %v639 = vsub.s32 %v636, %v638
        %v640 = vrot.slane %v632, %v639
        %v642 = vunpack.c.l.s4 1934713408
        %v643 = vunpack.c.0.s8 %v642
        %v644 = vlaneseq
        %v645 = vshrl.u32 %v644, 7
        %v646 = vsub.s32 %v643, %v645
        %v647 = vrot.slane %v633, %v646
        %v648 = vcombine.low %v615, %v631
        %v649 = vcombine.high %v615, %v631
        %v651 = vunpack.c.l.s4 1934713408
        %v652 = vunpack.c.0.s8 %v651
        %v653 = vlaneseq
        %v654 = vshrl.u32 %v653, 7
        %v655 = vsub.s32 %v652, %v654
        %v656 = vrot.slane %v648, %v655
        %v658 = vunpack.c.l.s4 1934713408
        %v659 = vunpack.c.0.s8 %v658
        %v660 = vlaneseq
        %v661 = vshrl.u32 %v660, 7
        %v662 = vsub.s32 %v659, %v661
        %v663 = vrot.slane %v649, %v662
        %v664 = vcombine.high %v640, 0.0
        %v665 = vcombine.high %v647, 0.0
        %v666 = vcombine.high %v656, 0.0
        %v667 = vcombine.high %v663, 0.0
        %v668 = vcombine.low %v640, %v647
        %v670 = vunpack.c.l.s4 1983009808
        %v671 = vunpack.c.0.s8 %v670
        %v672 = vlaneseq
        %v673 = vshrl.u32 %v672, 7
        %v674 = vsub.s32 %v671, %v673
        %v675 = vrot.slane %v668, %v674
        %v676 = vcombine.low %v664, %v665
        %v678 = vunpack.c.l.s4 1983009808
        %v679 = vunpack.c.0.s8 %v678
        %v680 = vlaneseq
        %v681 = vshrl.u32 %v680, 7
        %v682 = vsub.s32 %v679, %v681
        %v683 = vrot.slane %v676, %v682
        %v684 = vcombine.low %v656, %v663
        %v686 = vunpack.c.l.s4 1983009808
        %v687 = vunpack.c.0.s8 %v686
        %v688 = vlaneseq
        %v689 = vshrl.u32 %v688, 7
        %v690 = vsub.s32 %v687, %v689
        %v691 = vrot.slane %v684, %v690
        %v692 = vcombine.low %v666, %v667
        %v694 = vunpack.c.l.s4 1983009808
        %v695 = vunpack.c.0.s8 %v694
        %v696 = vlaneseq
        %v697 = vshrl.u32 %v696, 7
        %v698 = vsub.s32 %v695, %v697
        %v699 = vrot.slane %v692, %v698
        %v700 = vcombine.low %v675, %v683
        %v701 = vcombine.high %v675, %v683
        %v703 = vunpack.c.l.s4 1934713408
        %v704 = vunpack.c.0.s8 %v703
        %v705 = vlaneseq
        %v706 = vshrl.u32 %v705, 7
        %v707 = vsub.s32 %v704, %v706
        %v708 = vrot.slane %v700, %v707
        %v710 = vunpack.c.l.s4 1934713408
        %v711 = vunpack.c.0.s8 %v710
        %v712 = vlaneseq
        %v713 = vshrl.u32 %v712, 7
        %v714 = vsub.s32 %v711, %v713
        %v715 = vrot.slane %v701, %v714
        %v716 = vcombine.low %v691, %v699
        %v717 = vcombine.high %v691, %v699
        %v719 = vunpack.c.l.s4 1934713408
        %v720 = vunpack.c.0.s8 %v719
        %v721 = vlaneseq
        %v722 = vshrl.u32 %v721, 7
        %v723 = vsub.s32 %v720, %v722
        %v724 = vrot.slane %v716, %v723
        %v726 = vunpack.c.l.s4 1934713408
        %v727 = vunpack.c.0.s8 %v726
        %v728 = vlaneseq
        %v729 = vshrl.u32 %v728, 7
        %v730 = vsub.s32 %v727, %v729
        %v731 = vrot.slane %v717, %v730
        %v732 = vcombine.low %v708, %v724
        %v733 = vcombine.high %v708, %v724
        %v734 = vcombine.low %v715, %v731
        %v735 = vcombine.high %v715, %v731
        %v736 = vpack.c.bf16 %v732, %v732
        %v737 = vpack.c.bf16 %v733, %v733
        %v738 = vpack.c.bf16 %v734, %v734
        %v739 = vpack.c.bf16 %v735, %v735
        %741 = vrot.lane.b32.xlu0 %v435, 120
        %v742 = vpop.permute.xlu0 %741
        %744 = vrot.lane.b32.xlu0 %v435, 112
        %v745 = vpop.permute.xlu0 %744
        %747 = vrot.lane.b32.xlu0 %v435, 104
        %v748 = vpop.permute.xlu0 %747
        %v750 = vcombine.low %v435, %v745
        %v751 = vcombine.high %v435, %v745
        %v753 = vunpack.c.l.s4 1983009808
        %v754 = vunpack.c.0.s8 %v753
        %v755 = vlaneseq
        %v756 = vshrl.u32 %v755, 7
        %v757 = vsub.s32 %v754, %v756
        %v758 = vrot.slane %v750, %v757
        %v760 = vunpack.c.l.s4 1983009808
        %v761 = vunpack.c.0.s8 %v760
        %v762 = vlaneseq
        %v763 = vshrl.u32 %v762, 7
        %v764 = vsub.s32 %v761, %v763
        %v765 = vrot.slane %v751, %v764
        %v766 = vcombine.low %v742, %v748
        %v767 = vcombine.high %v742, %v748
        %v769 = vunpack.c.l.s4 1983009808
        %v770 = vunpack.c.0.s8 %v769
        %v771 = vlaneseq
        %v772 = vshrl.u32 %v771, 7
        %v773 = vsub.s32 %v770, %v772
        %v774 = vrot.slane %v766, %v773
        %v776 = vunpack.c.l.s4 1983009808
        %v777 = vunpack.c.0.s8 %v776
        %v778 = vlaneseq
        %v779 = vshrl.u32 %v778, 7
        %v780 = vsub.s32 %v777, %v779
        %v781 = vrot.slane %v767, %v780
        %v782 = vcombine.low %v758, %v774
        %v783 = vcombine.high %v758, %v774
        %v785 = vunpack.c.l.s4 1934713408
        %v786 = vunpack.c.0.s8 %v785
        %v787 = vlaneseq
        %v788 = vshrl.u32 %v787, 7
        %v789 = vsub.s32 %v786, %v788
        %v790 = vrot.slane %v782, %v789
        %v792 = vunpack.c.l.s4 1934713408
        %v793 = vunpack.c.0.s8 %v792
        %v794 = vlaneseq
        %v795 = vshrl.u32 %v794, 7
        %v796 = vsub.s32 %v793, %v795
        %v797 = vrot.slane %v783, %v796
        %v798 = vcombine.low %v765, %v781
        %v799 = vcombine.high %v765, %v781
        %v801 = vunpack.c.l.s4 1934713408
        %v802 = vunpack.c.0.s8 %v801
        %v803 = vlaneseq
        %v804 = vshrl.u32 %v803, 7
        %v805 = vsub.s32 %v802, %v804
        %v806 = vrot.slane %v798, %v805
        %v808 = vunpack.c.l.s4 1934713408
        %v809 = vunpack.c.0.s8 %v808
        %v810 = vlaneseq
        %v811 = vshrl.u32 %v810, 7
        %v812 = vsub.s32 %v809, %v811
        %v813 = vrot.slane %v799, %v812
        %v814 = vcombine.high %v790, 0.0
        %v815 = vcombine.high %v797, 0.0
        %v816 = vcombine.high %v806, 0.0
        %v817 = vcombine.high %v813, 0.0
        %v818 = vcombine.low %v790, %v797
        %v820 = vunpack.c.l.s4 1983009808
        %v821 = vunpack.c.0.s8 %v820
        %v822 = vlaneseq
        %v823 = vshrl.u32 %v822, 7
        %v824 = vsub.s32 %v821, %v823
        %v825 = vrot.slane %v818, %v824
        %v826 = vcombine.low %v814, %v815
        %v828 = vunpack.c.l.s4 1983009808
        %v829 = vunpack.c.0.s8 %v828
        %v830 = vlaneseq
        %v831 = vshrl.u32 %v830, 7
        %v832 = vsub.s32 %v829, %v831
        %v833 = vrot.slane %v826, %v832
        %v834 = vcombine.low %v806, %v813
        %v836 = vunpack.c.l.s4 1983009808
        %v837 = vunpack.c.0.s8 %v836
        %v838 = vlaneseq
        %v839 = vshrl.u32 %v838, 7
        %v840 = vsub.s32 %v837, %v839
        %v841 = vrot.slane %v834, %v840
        %v842 = vcombine.low %v816, %v817
        %v844 = vunpack.c.l.s4 1983009808
        %v845 = vunpack.c.0.s8 %v844
        %v846 = vlaneseq
        %v847 = vshrl.u32 %v846, 7
        %v848 = vsub.s32 %v845, %v847
        %v849 = vrot.slane %v842, %v848
        %v850 = vcombine.low %v825, %v833
        %v851 = vcombine.high %v825, %v833
        %v853 = vunpack.c.l.s4 1934713408
        %v854 = vunpack.c.0.s8 %v853
        %v855 = vlaneseq
        %v856 = vshrl.u32 %v855, 7
        %v857 = vsub.s32 %v854, %v856
        %v858 = vrot.slane %v850, %v857
        %v860 = vunpack.c.l.s4 1934713408
        %v861 = vunpack.c.0.s8 %v860
        %v862 = vlaneseq
        %v863 = vshrl.u32 %v862, 7
        %v864 = vsub.s32 %v861, %v863
        %v865 = vrot.slane %v851, %v864
        %v866 = vcombine.low %v841, %v849
        %v867 = vcombine.high %v841, %v849
        %v869 = vunpack.c.l.s4 1934713408
        %v870 = vunpack.c.0.s8 %v869
        %v871 = vlaneseq
        %v872 = vshrl.u32 %v871, 7
        %v873 = vsub.s32 %v870, %v872
        %v874 = vrot.slane %v866, %v873
        %v876 = vunpack.c.l.s4 1934713408
        %v877 = vunpack.c.0.s8 %v876
        %v878 = vlaneseq
        %v879 = vshrl.u32 %v878, 7
        %v880 = vsub.s32 %v877, %v879
        %v881 = vrot.slane %v867, %v880
        %v882 = vcombine.low %v858, %v874
        %v883 = vcombine.high %v858, %v874
        %v884 = vcombine.low %v865, %v881
        %v885 = vcombine.high %v865, %v881
        %v886 = vpack.c.bf16 %v882, %v882
        %v887 = vpack.c.bf16 %v883, %v883
        %v888 = vpack.c.bf16 %v884, %v884
        %v889 = vpack.c.bf16 %v885, %v885
        %vm890 = vcmask 64512
        %v892 = vsel %vm890, %v586, 0
        %v895 = vsel %vm890, %v736, 0
        %897 = vmatprep.subr.bf16.mxu0 0
        %898 = vmatpush1.bf16.xpose.msra.mxu0 %v895
        %899 = vmatprep.subr.bf16.mxu0 0
        %900 = vmatpush1.bf16.xpose.msra.mxu0 0
        %901 = vmatprep.subr.bf16.mxu0 0
        %902 = vmatpush1.bf16.xpose.msra.mxu0 0
        %903 = vmatprep.subr.bf16.mxu0 0
        %904 = vmatpush1.bf16.xpose.msra.mxu0 0
        %905 = vmatprep.subr.bf16.mxu0 0
        %906 = vmatpush1.bf16.xpose.msra.mxu0 0
        %907 = vmatprep.subr.bf16.mxu0 0
        %908 = vmatpush1.bf16.xpose.msra.mxu0 0
        %909 = vmatprep.subr.bf16.mxu0 0
        %910 = vmatpush1.bf16.xpose.msra.mxu0 0
        %911 = vmatprep.subr.bf16.mxu0 0
        %912 = vmatpush1.bf16.xpose.msra.mxu0 0
        %913 = vmatprep.subr.bf16.mxu0 0
        %914 = vmatpush1.bf16.xpose.msra.mxu0 0
        %915 = vmatprep.subr.bf16.mxu0 0
        %916 = vmatpush1.bf16.xpose.msra.mxu0 0
        %917 = vmatprep.subr.bf16.mxu0 0
        %918 = vmatpush1.bf16.xpose.msra.mxu0 0
        %919 = vmatprep.subr.bf16.mxu0 0
        %920 = vmatpush1.bf16.xpose.msra.mxu0 0
        %921 = vmatprep.subr.bf16.mxu0 0
        %922 = vmatpush1.bf16.xpose.msra.mxu0 0
        %923 = vmatprep.subr.bf16.mxu0 0
        %924 = vmatpush1.bf16.xpose.msra.mxu0 0
        %925 = vmatprep.subr.bf16.mxu0 0
        %926 = vmatpush1.bf16.xpose.msra.mxu0 0
        %927 = vmatprep.subr.bf16.mxu0 0
        %928 = vmatpush1.bf16.xpose.msra.mxu0 0
        %929 = vmatprep.mubr.bf16.mxu0 0
        %930 = vmatmul.mubr.bf16.gmra.mrb[0].mxu0 %v892
        %v931 = vpop.f32.mrb[0].mxu0
        %v932 = vadd.f32 0.0, %v931
        %v933 = vpop.f32.mrb[0].mxu0
        %v934 = vpop.f32.mrb[0].mxu0
        %v935 = vpop.f32.mrb[0].mxu0
        %936 = vdwg.mxu0
        %v938 = vsel %vm890, %v587, 0
        %v941 = vsel %vm890, %v737, 0
        %943 = vmatprep.subr.bf16.mxu0 0
        %944 = vmatpush1.bf16.xpose.msra.mxu0 %v941
        %945 = vmatprep.subr.bf16.mxu0 0
        %946 = vmatpush1.bf16.xpose.msra.mxu0 0
        %947 = vmatprep.subr.bf16.mxu0 0
        %948 = vmatpush1.bf16.xpose.msra.mxu0 0
        %949 = vmatprep.subr.bf16.mxu0 0
        %950 = vmatpush1.bf16.xpose.msra.mxu0 0
        %951 = vmatprep.subr.bf16.mxu0 0
        %952 = vmatpush1.bf16.xpose.msra.mxu0 0
        %953 = vmatprep.subr.bf16.mxu0 0
        %954 = vmatpush1.bf16.xpose.msra.mxu0 0
        %955 = vmatprep.subr.bf16.mxu0 0
        %956 = vmatpush1.bf16.xpose.msra.mxu0 0
        %957 = vmatprep.subr.bf16.mxu0 0
        %958 = vmatpush1.bf16.xpose.msra.mxu0 0
        %959 = vmatprep.subr.bf16.mxu0 0
        %960 = vmatpush1.bf16.xpose.msra.mxu0 0
        %961 = vmatprep.subr.bf16.mxu0 0
        %962 = vmatpush1.bf16.xpose.msra.mxu0 0
        %963 = vmatprep.subr.bf16.mxu0 0
        %964 = vmatpush1.bf16.xpose.msra.mxu0 0
        %965 = vmatprep.subr.bf16.mxu0 0
        %966 = vmatpush1.bf16.xpose.msra.mxu0 0
        %967 = vmatprep.subr.bf16.mxu0 0
        %968 = vmatpush1.bf16.xpose.msra.mxu0 0
        %969 = vmatprep.subr.bf16.mxu0 0
        %970 = vmatpush1.bf16.xpose.msra.mxu0 0
        %971 = vmatprep.subr.bf16.mxu0 0
        %972 = vmatpush1.bf16.xpose.msra.mxu0 0
        %973 = vmatprep.subr.bf16.mxu0 0
        %974 = vmatpush1.bf16.xpose.msra.mxu0 0
        %975 = vmatprep.mubr.bf16.mxu0 0
        %976 = vmatmul.mubr.bf16.gmra.mrb[0].mxu0 %v938
        %v977 = vpop.f32.mrb[0].mxu0
        %v978 = vadd.f32 0.0, %v977
        %v979 = vpop.f32.mrb[0].mxu0
        %v980 = vpop.f32.mrb[0].mxu0
        %v981 = vpop.f32.mrb[0].mxu0
        %982 = vdwg.mxu0
        %v984 = vsel %vm890, %v588, 0
        %v987 = vsel %vm890, %v738, 0
        %989 = vmatprep.subr.bf16.mxu0 0
        %990 = vmatpush1.bf16.xpose.msra.mxu0 %v987
        %991 = vmatprep.subr.bf16.mxu0 0
        %992 = vmatpush1.bf16.xpose.msra.mxu0 0
        %993 = vmatprep.subr.bf16.mxu0 0
        %994 = vmatpush1.bf16.xpose.msra.mxu0 0
        %995 = vmatprep.subr.bf16.mxu0 0
        %996 = vmatpush1.bf16.xpose.msra.mxu0 0
        %997 = vmatprep.subr.bf16.mxu0 0
        %998 = vmatpush1.bf16.xpose.msra.mxu0 0
        %999 = vmatprep.subr.bf16.mxu0 0
        %1000 = vmatpush1.bf16.xpose.msra.mxu0 0
        %1001 = vmatprep.subr.bf16.mxu0 0
        %1002 = vmatpush1.bf16.xpose.msra.mxu0 0
        %1003 = vmatprep.subr.bf16.mxu0 0
        %1004 = vmatpush1.bf16.xpose.msra.mxu0 0
        %1005 = vmatprep.subr.bf16.mxu0 0
        %1006 = vmatpush1.bf16.xpose.msra.mxu0 0
        %1007 = vmatprep.subr.bf16.mxu0 0
        %1008 = vmatpush1.bf16.xpose.msra.mxu0 0
        %1009 = vmatprep.subr.bf16.mxu0 0
        %1010 = vmatpush1.bf16.xpose.msra.mxu0 0
        %1011 = vmatprep.subr.bf16.mxu0 0
        %1012 = vmatpush1.bf16.xpose.msra.mxu0 0
        %1013 = vmatprep.subr.bf16.mxu0 0
        %1014 = vmatpush1.bf16.xpose.msra.mxu0 0
        %1015 = vmatprep.subr.bf16.mxu0 0
        %1016 = vmatpush1.bf16.xpose.msra.mxu0 0
        %1017 = vmatprep.subr.bf16.mxu0 0
        %1018 = vmatpush1.bf16.xpose.msra.mxu0 0
        %1019 = vmatprep.subr.bf16.mxu0 0
        %1020 = vmatpush1.bf16.xpose.msra.mxu0 0
        %1021 = vmatprep.mubr.bf16.mxu0 0
        %1022 = vmatmul.mubr.bf16.gmra.mrb[0].mxu0 %v984
        %v1023 = vpop.f32.mrb[0].mxu0
        %v1024 = vadd.f32 0.0, %v1023
        %v1025 = vpop.f32.mrb[0].mxu0
        %v1026 = vpop.f32.mrb[0].mxu0
        %v1027 = vpop.f32.mrb[0].mxu0
        %1028 = vdwg.mxu0
        %v1030 = vsel %vm890, %v589, 0
        %v1033 = vsel %vm890, %v739, 0
        %1035 = vmatprep.subr.bf16.mxu0 0
        %1036 = vmatpush1.bf16.xpose.msra.mxu0 %v1033
        %1037 = vmatprep.subr.bf16.mxu0 0
        %1038 = vmatpush1.bf16.xpose.msra.mxu0 0
        %1039 = vmatprep.subr.bf16.mxu0 0
        %1040 = vmatpush1.bf16.xpose.msra.mxu0 0
        %1041 = vmatprep.subr.bf16.mxu0 0
        %1042 = vmatpush1.bf16.xpose.msra.mxu0 0
        %1043 = vmatprep.subr.bf16.mxu0 0
        %1044 = vmatpush1.bf16.xpose.msra.mxu0 0
        %1045 = vmatprep.subr.bf16.mxu0 0
        %1046 = vmatpush1.bf16.xpose.msra.mxu0 0
        %1047 = vmatprep.subr.bf16.mxu0 0
        %1048 = vmatpush1.bf16.xpose.msra.mxu0 0
        %1049 = vmatprep.subr.bf16.mxu0 0
        %1050 = vmatpush1.bf16.xpose.msra.mxu0 0
        %1051 = vmatprep.subr.bf16.mxu0 0
        %1052 = vmatpush1.bf16.xpose.msra.mxu0 0
        %1053 = vmatprep.subr.bf16.mxu0 0
        %1054 = vmatpush1.bf16.xpose.msra.mxu0 0
        %1055 = vmatprep.subr.bf16.mxu0 0
        %1056 = vmatpush1.bf16.xpose.msra.mxu0 0
        %1057 = vmatprep.subr.bf16.mxu0 0
        %1058 = vmatpush1.bf16.xpose.msra.mxu0 0
        %1059 = vmatprep.subr.bf16.mxu0 0
        %1060 = vmatpush1.bf16.xpose.msra.mxu0 0
        %1061 = vmatprep.subr.bf16.mxu0 0
        %1062 = vmatpush1.bf16.xpose.msra.mxu0 0
        %1063 = vmatprep.subr.bf16.mxu0 0
        %1064 = vmatpush1.bf16.xpose.msra.mxu0 0
        %1065 = vmatprep.subr.bf16.mxu0 0
        %1066 = vmatpush1.bf16.xpose.msra.mxu0 0
        %1067 = vmatprep.mubr.bf16.mxu0 0
        %1068 = vmatmul.mubr.bf16.gmra.mrb[0].mxu0 %v1030
        %v1069 = vpop.f32.mrb[0].mxu0
        %v1070 = vadd.f32 0.0, %v1069
        %v1071 = vpop.f32.mrb[0].mxu0
        %v1072 = vpop.f32.mrb[0].mxu0
        %v1073 = vpop.f32.mrb[0].mxu0
        %1074 = vdwg.mxu0
        %v1075 = vlaneseq
        %v1076 = vshrl.u32 %v1075, 7
        %v1077 = vlaneseq
        %v1078 = vand.u32 %v1077, 127
        %vm1079 = vcmp.le.s32.totalorder %v1078, %v1076
        %v1080 = vsel %vm1079, 1, 0
        %vm1081 = vcmp.eq.s32.totalorder %v1080, 1
        %v1082 = vsel %vm1081, %v932, -1e+30
        %v1083 = vsel %vm1081, %v978, -1e+30
        %v1084 = vsel %vm1081, %v1024, -1e+30
        %v1085 = vsel %vm1081, %v1070, -1e+30
        %v1086 = vsel %vm890, %v1082, -inf
        %1087 = vmax.xlane.f32.xlu0 %v1086
        %v1088 = vpop.xlane.xlu0 %1087
        %v1089 = vsel %vm890, %v1083, -inf
        %1090 = vmax.xlane.f32.xlu0 %v1089
        %v1091 = vpop.xlane.xlu0 %1090
        %v1092 = vsel %vm890, %v1084, -inf
        %1093 = vmax.xlane.f32.xlu0 %v1092
        %v1094 = vpop.xlane.xlu0 %1093
        %v1095 = vsel %vm890, %v1085, -inf
        %1096 = vmax.xlane.f32.xlu0 %v1095
        %v1097 = vpop.xlane.xlu0 %1096
        %v1098 = vsub.f32 %v1082, %v1088
        %v1099 = vsub.f32 %v1083, %v1091
        %v1100 = vsub.f32 %v1084, %v1094
        %v1101 = vsub.f32 %v1085, %v1097
        %v1102 = vmul.f32 %v1098, 1.442695
        %v1103 = vpow.pop %v1102
        %v1104 = vmul.f32 %v1099, 1.442695
        %v1105 = vpow.pop %v1104
        %v1106 = vmul.f32 %v1100, 1.442695
        %v1107 = vpow.pop %v1106
        %v1108 = vmul.f32 %v1101, 1.442695
        %v1109 = vpow.pop %v1108
        %v1110 = vsel %vm890, %v1103, 0.0
        %1111 = vadd.xlane.f32.xlu0 %v1110
        %v1112 = vpop.xlane.xlu0 %1111
        %v1113 = vsel %vm890, %v1105, 0.0
        %1114 = vadd.xlane.f32.xlu0 %v1113
        %v1115 = vpop.xlane.xlu0 %1114
        %v1116 = vsel %vm890, %v1107, 0.0
        %1117 = vadd.xlane.f32.xlu0 %v1116
        %v1118 = vpop.xlane.xlu0 %1117
        %v1119 = vsel %vm890, %v1109, 0.0
        %1120 = vadd.xlane.f32.xlu0 %v1119
        %v1121 = vpop.xlane.xlu0 %1120
        %v1122 = vpack.c.bf16 %v1103, %v1103
        %v1123 = vpack.c.bf16 %v1105, %v1105
        %v1124 = vpack.c.bf16 %v1107, %v1107
        %v1125 = vpack.c.bf16 %v1109, %v1109
        %v1127 = vsel %vm890, %v1122, 0
        %vm1129 = vcmask 1043456
        %v1131 = vsel %vm1129, %v886, 0
        %1133 = vmatprep.subr.bf16.mxu0 0
        %1134 = vmatpush1.bf16.msra.mxu0 %v1131
        %1135 = vmatprep.subr.bf16.mxu0 0
        %1136 = vmatpush1.bf16.msra.mxu0 0
        %1137 = vmatprep.subr.bf16.mxu0 0
        %1138 = vmatpush1.bf16.msra.mxu0 0
        %1139 = vmatprep.subr.bf16.mxu0 0
        %1140 = vmatpush1.bf16.msra.mxu0 0
        %1141 = vmatprep.subr.bf16.mxu0 0
        %1142 = vmatpush1.bf16.msra.mxu0 0
        %1143 = vmatprep.subr.bf16.mxu0 0
        %1144 = vmatpush1.bf16.msra.mxu0 0
        %1145 = vmatprep.subr.bf16.mxu0 0
        %1146 = vmatpush1.bf16.msra.mxu0 0
        %1147 = vmatprep.subr.bf16.mxu0 0
        %1148 = vmatpush1.bf16.msra.mxu0 0
        %1149 = vmatprep.subr.bf16.mxu0 0
        %1150 = vmatpush1.bf16.msra.mxu0 0
        %1151 = vmatprep.subr.bf16.mxu0 0
        %1152 = vmatpush1.bf16.msra.mxu0 0
        %1153 = vmatprep.subr.bf16.mxu0 0
        %1154 = vmatpush1.bf16.msra.mxu0 0
        %1155 = vmatprep.subr.bf16.mxu0 0
        %1156 = vmatpush1.bf16.msra.mxu0 0
        %1157 = vmatprep.subr.bf16.mxu0 0
        %1158 = vmatpush1.bf16.msra.mxu0 0
        %1159 = vmatprep.subr.bf16.mxu0 0
        %1160 = vmatpush1.bf16.msra.mxu0 0
        %1161 = vmatprep.subr.bf16.mxu0 0
        %1162 = vmatpush1.bf16.msra.mxu0 0
        %1163 = vmatprep.subr.bf16.mxu0 0
        %1164 = vmatpush1.bf16.msra.mxu0 0
        %1165 = vmatprep.mubr.bf16.mxu0 0
        %1166 = vmatmul.mubr.bf16.gmra.mrb[0].mxu0 %v1127
        %v1167 = vpop.f32.mrb[0].mxu0
        %v1168 = vadd.f32 0.0, %v1167
        %v1169 = vpop.f32.mrb[0].mxu0
        %v1170 = vpop.f32.mrb[0].mxu0
        %v1171 = vpop.f32.mrb[0].mxu0
        %1172 = vdwg.mxu0
        %v1174 = vsel %vm890, %v1123, 0
        %v1177 = vsel %vm1129, %v887, 0
        %1179 = vmatprep.subr.bf16.mxu0 0
        %1180 = vmatpush1.bf16.msra.mxu0 %v1177
        %1181 = vmatprep.subr.bf16.mxu0 0
        %1182 = vmatpush1.bf16.msra.mxu0 0
        %1183 = vmatprep.subr.bf16.mxu0 0
        %1184 = vmatpush1.bf16.msra.mxu0 0
        %1185 = vmatprep.subr.bf16.mxu0 0
        %1186 = vmatpush1.bf16.msra.mxu0 0
        %1187 = vmatprep.subr.bf16.mxu0 0
        %1188 = vmatpush1.bf16.msra.mxu0 0
        %1189 = vmatprep.subr.bf16.mxu0 0
        %1190 = vmatpush1.bf16.msra.mxu0 0
        %1191 = vmatprep.subr.bf16.mxu0 0
        %1192 = vmatpush1.bf16.msra.mxu0 0
        %1193 = vmatprep.subr.bf16.mxu0 0
        %1194 = vmatpush1.bf16.msra.mxu0 0
        %1195 = vmatprep.subr.bf16.mxu0 0
        %1196 = vmatpush1.bf16.msra.mxu0 0
        %1197 = vmatprep.subr.bf16.mxu0 0
        %1198 = vmatpush1.bf16.msra.mxu0 0
        %1199 = vmatprep.subr.bf16.mxu0 0
        %1200 = vmatpush1.bf16.msra.mxu0 0
        %1201 = vmatprep.subr.bf16.mxu0 0
        %1202 = vmatpush1.bf16.msra.mxu0 0
        %1203 = vmatprep.subr.bf16.mxu0 0
        %1204 = vmatpush1.bf16.msra.mxu0 0
        %1205 = vmatprep.subr.bf16.mxu0 0
        %1206 = vmatpush1.bf16.msra.mxu0 0
        %1207 = vmatprep.subr.bf16.mxu0 0
        %1208 = vmatpush1.bf16.msra.mxu0 0
        %1209 = vmatprep.subr.bf16.mxu0 0
        %1210 = vmatpush1.bf16.msra.mxu0 0
        %1211 = vmatprep.mubr.bf16.mxu0 0
        %1212 = vmatmul.mubr.bf16.gmra.mrb[0].mxu0 %v1174
        %v1213 = vpop.f32.mrb[0].mxu0
        %v1214 = vadd.f32 0.0, %v1213
        %v1215 = vpop.f32.mrb[0].mxu0
        %v1216 = vpop.f32.mrb[0].mxu0
        %v1217 = vpop.f32.mrb[0].mxu0
        %1218 = vdwg.mxu0
        %v1220 = vsel %vm890, %v1124, 0
        %v1223 = vsel %vm1129, %v888, 0
        %1225 = vmatprep.subr.bf16.mxu0 0
        %1226 = vmatpush1.bf16.msra.mxu0 %v1223
        %1227 = vmatprep.subr.bf16.mxu0 0
        %1228 = vmatpush1.bf16.msra.mxu0 0
        %1229 = vmatprep.subr.bf16.mxu0 0
        %1230 = vmatpush1.bf16.msra.mxu0 0
        %1231 = vmatprep.subr.bf16.mxu0 0
        %1232 = vmatpush1.bf16.msra.mxu0 0
        %1233 = vmatprep.subr.bf16.mxu0 0
        %1234 = vmatpush1.bf16.msra.mxu0 0
        %1235 = vmatprep.subr.bf16.mxu0 0
        %1236 = vmatpush1.bf16.msra.mxu0 0
        %1237 = vmatprep.subr.bf16.mxu0 0
        %1238 = vmatpush1.bf16.msra.mxu0 0
        %1239 = vmatprep.subr.bf16.mxu0 0
        %1240 = vmatpush1.bf16.msra.mxu0 0
        %1241 = vmatprep.subr.bf16.mxu0 0
        %1242 = vmatpush1.bf16.msra.mxu0 0
        %1243 = vmatprep.subr.bf16.mxu0 0
        %1244 = vmatpush1.bf16.msra.mxu0 0
        %1245 = vmatprep.subr.bf16.mxu0 0
        %1246 = vmatpush1.bf16.msra.mxu0 0
        %1247 = vmatprep.subr.bf16.mxu0 0
        %1248 = vmatpush1.bf16.msra.mxu0 0
        %1249 = vmatprep.subr.bf16.mxu0 0
        %1250 = vmatpush1.bf16.msra.mxu0 0
        %1251 = vmatprep.subr.bf16.mxu0 0
        %1252 = vmatpush1.bf16.msra.mxu0 0
        %1253 = vmatprep.subr.bf16.mxu0 0
        %1254 = vmatpush1.bf16.msra.mxu0 0
        %1255 = vmatprep.subr.bf16.mxu0 0
        %1256 = vmatpush1.bf16.msra.mxu0 0
        %1257 = vmatprep.mubr.bf16.mxu0 0
        %1258 = vmatmul.mubr.bf16.gmra.mrb[0].mxu0 %v1220
        %v1259 = vpop.f32.mrb[0].mxu0
        %v1260 = vadd.f32 0.0, %v1259
        %v1261 = vpop.f32.mrb[0].mxu0
        %v1262 = vpop.f32.mrb[0].mxu0
        %v1263 = vpop.f32.mrb[0].mxu0
        %1264 = vdwg.mxu0
        %v1266 = vsel %vm890, %v1125, 0
        %v1269 = vsel %vm1129, %v889, 0
        %1271 = vmatprep.subr.bf16.mxu0 0
        %1272 = vmatpush1.bf16.msra.mxu0 %v1269
        %1273 = vmatprep.subr.bf16.mxu0 0
        %1274 = vmatpush1.bf16.msra.mxu0 0
        %1275 = vmatprep.subr.bf16.mxu0 0
        %1276 = vmatpush1.bf16.msra.mxu0 0
        %1277 = vmatprep.subr.bf16.mxu0 0
        %1278 = vmatpush1.bf16.msra.mxu0 0
        %1279 = vmatprep.subr.bf16.mxu0 0
        %1280 = vmatpush1.bf16.msra.mxu0 0
        %1281 = vmatprep.subr.bf16.mxu0 0
        %1282 = vmatpush1.bf16.msra.mxu0 0
        %1283 = vmatprep.subr.bf16.mxu0 0
        %1284 = vmatpush1.bf16.msra.mxu0 0
        %1285 = vmatprep.subr.bf16.mxu0 0
        %1286 = vmatpush1.bf16.msra.mxu0 0
        %1287 = vmatprep.subr.bf16.mxu0 0
        %1288 = vmatpush1.bf16.msra.mxu0 0
        %1289 = vmatprep.subr.bf16.mxu0 0
        %1290 = vmatpush1.bf16.msra.mxu0 0
        %1291 = vmatprep.subr.bf16.mxu0 0
        %1292 = vmatpush1.bf16.msra.mxu0 0
        %1293 = vmatprep.subr.bf16.mxu0 0
        %1294 = vmatpush1.bf16.msra.mxu0 0
        %1295 = vmatprep.subr.bf16.mxu0 0
        %1296 = vmatpush1.bf16.msra.mxu0 0
        %1297 = vmatprep.subr.bf16.mxu0 0
        %1298 = vmatpush1.bf16.msra.mxu0 0
        %1299 = vmatprep.subr.bf16.mxu0 0
        %1300 = vmatpush1.bf16.msra.mxu0 0
        %1301 = vmatprep.subr.bf16.mxu0 0
        %1302 = vmatpush1.bf16.msra.mxu0 0
        %1303 = vmatprep.mubr.bf16.mxu0 0
        %1304 = vmatmul.mubr.bf16.gmra.mrb[0].mxu0 %v1266
        %v1305 = vpop.f32.mrb[0].mxu0
        %v1306 = vadd.f32 0.0, %v1305
        %v1307 = vpop.f32.mrb[0].mxu0
        %v1308 = vpop.f32.mrb[0].mxu0
        %v1309 = vpop.f32.mrb[0].mxu0
        %1310 = vdwg.mxu0
        %v1311 = vrcp.pop %v1112
        %v1312 = vrcp.pop %v1115
        %v1313 = vrcp.pop %v1118
        %v1314 = vrcp.pop %v1121
        %v1315 = vmul.f32 %v1168, %v1311
        %v1316 = vmul.f32 %v1214, %v1312
        %v1317 = vmul.f32 %v1260, %v1313
        %v1318 = vmul.f32 %v1306, %v1314
        %v1319 = vcombine.low %v1315, %v1317
        %v1320 = vcombine.high %v1315, %v1317
        %v1322 = vunpack.c.l.s4 1983009808
        %v1323 = vunpack.c.0.s8 %v1322
        %v1324 = vlaneseq
        %v1325 = vshrl.u32 %v1324, 7
        %v1326 = vsub.s32 %v1323, %v1325
        %v1327 = vrot.slane %v1319, %v1326
        %v1329 = vunpack.c.l.s4 1983009808
        %v1330 = vunpack.c.0.s8 %v1329
        %v1331 = vlaneseq
        %v1332 = vshrl.u32 %v1331, 7
        %v1333 = vsub.s32 %v1330, %v1332
        %v1334 = vrot.slane %v1320, %v1333
        %v1335 = vcombine.low %v1316, %v1318
        %v1336 = vcombine.high %v1316, %v1318
        %v1338 = vunpack.c.l.s4 1983009808
        %v1339 = vunpack.c.0.s8 %v1338
        %v1340 = vlaneseq
        %v1341 = vshrl.u32 %v1340, 7
        %v1342 = vsub.s32 %v1339, %v1341
        %v1343 = vrot.slane %v1335, %v1342
        %v1345 = vunpack.c.l.s4 1983009808
        %v1346 = vunpack.c.0.s8 %v1345
        %v1347 = vlaneseq
        %v1348 = vshrl.u32 %v1347, 7
        %v1349 = vsub.s32 %v1346, %v1348
        %v1350 = vrot.slane %v1336, %v1349
        %v1351 = vcombine.low %v1327, %v1343
        %v1352 = vcombine.high %v1327, %v1343
        %v1354 = vunpack.c.l.s4 1934713408
        %v1355 = vunpack.c.0.s8 %v1354
        %v1356 = vlaneseq
        %v1357 = vshrl.u32 %v1356, 7
        %v1358 = vsub.s32 %v1355, %v1357
        %v1359 = vrot.slane %v1351, %v1358
        %v1361 = vunpack.c.l.s4 1934713408
        %v1362 = vunpack.c.0.s8 %v1361
        %v1363 = vlaneseq
        %v1364 = vshrl.u32 %v1363, 7
        %v1365 = vsub.s32 %v1362, %v1364
        %v1366 = vrot.slane %v1352, %v1365
        %v1367 = vcombine.low %v1334, %v1350
        %v1368 = vcombine.high %v1334, %v1350
        %v1370 = vunpack.c.l.s4 1934713408
        %v1371 = vunpack.c.0.s8 %v1370
        %v1372 = vlaneseq
        %v1373 = vshrl.u32 %v1372, 7
        %v1374 = vsub.s32 %v1371, %v1373
        %v1375 = vrot.slane %v1367, %v1374
        %v1377 = vunpack.c.l.s4 1934713408
        %v1378 = vunpack.c.0.s8 %v1377
        %v1379 = vlaneseq
        %v1380 = vshrl.u32 %v1379, 7
        %v1381 = vsub.s32 %v1378, %v1380
        %v1382 = vrot.slane %v1368, %v1381
        %v1383 = vcombine.high %v1359, 0.0
        %v1384 = vcombine.high %v1366, 0.0
        %v1385 = vcombine.high %v1375, 0.0
        %v1386 = vcombine.high %v1382, 0.0
        %v1387 = vcombine.low %v1359, %v1366
        %v1389 = vunpack.c.l.s4 1983009808
        %v1390 = vunpack.c.0.s8 %v1389
        %v1391 = vlaneseq
        %v1392 = vshrl.u32 %v1391, 7
        %v1393 = vsub.s32 %v1390, %v1392
        %v1394 = vrot.slane %v1387, %v1393
        %v1395 = vcombine.low %v1383, %v1384
        %v1397 = vunpack.c.l.s4 1983009808
        %v1398 = vunpack.c.0.s8 %v1397
        %v1399 = vlaneseq
        %v1400 = vshrl.u32 %v1399, 7
        %v1401 = vsub.s32 %v1398, %v1400
        %v1402 = vrot.slane %v1395, %v1401
        %v1403 = vcombine.low %v1375, %v1382
        %v1405 = vunpack.c.l.s4 1983009808
        %v1406 = vunpack.c.0.s8 %v1405
        %v1407 = vlaneseq
        %v1408 = vshrl.u32 %v1407, 7
        %v1409 = vsub.s32 %v1406, %v1408
        %v1410 = vrot.slane %v1403, %v1409
        %v1411 = vcombine.low %v1385, %v1386
        %v1413 = vunpack.c.l.s4 1983009808
        %v1414 = vunpack.c.0.s8 %v1413
        %v1415 = vlaneseq
        %v1416 = vshrl.u32 %v1415, 7
        %v1417 = vsub.s32 %v1414, %v1416
        %v1418 = vrot.slane %v1411, %v1417
        %v1419 = vcombine.low %v1394, %v1402
        %v1420 = vcombine.high %v1394, %v1402
        %v1422 = vunpack.c.l.s4 1934713408
        %v1423 = vunpack.c.0.s8 %v1422
        %v1424 = vlaneseq
        %v1425 = vshrl.u32 %v1424, 7
        %v1426 = vsub.s32 %v1423, %v1425
        %v1427 = vrot.slane %v1419, %v1426
        %v1429 = vunpack.c.l.s4 1934713408
        %v1430 = vunpack.c.0.s8 %v1429
        %v1431 = vlaneseq
        %v1432 = vshrl.u32 %v1431, 7
        %v1433 = vsub.s32 %v1430, %v1432
        %v1434 = vrot.slane %v1420, %v1433
        %v1435 = vcombine.low %v1410, %v1418
        %v1436 = vcombine.high %v1410, %v1418
        %v1438 = vunpack.c.l.s4 1934713408
        %v1439 = vunpack.c.0.s8 %v1438
        %v1440 = vlaneseq
        %v1441 = vshrl.u32 %v1440, 7
        %v1442 = vsub.s32 %v1439, %v1441
        %v1443 = vrot.slane %v1435, %v1442
        %v1445 = vunpack.c.l.s4 1934713408
        %v1446 = vunpack.c.0.s8 %v1445
        %v1447 = vlaneseq
        %v1448 = vshrl.u32 %v1447, 7
        %v1449 = vsub.s32 %v1446, %v1448
        %v1450 = vrot.slane %v1436, %v1449
        %v1451 = vcombine.low %v1427, %v1443
        %v1452 = vcombine.high %v1427, %v1443
        %v1453 = vcombine.low %v1434, %v1450
        %v1454 = vcombine.high %v1434, %v1450
        %1456 = vrot.lane.b32.xlu0 %v1452, 8
        %v1457 = vpop.permute.xlu0 %1456
        %1460 = vrot.lane.b32.xlu0 %v1453, 16
        %v1461 = vpop.permute.xlu0 %1460
        %1464 = vrot.lane.b32.xlu0 %v1454, 24
        %v1465 = vpop.permute.xlu0 %1464
        %v1467 = vsel %vm890, %v1451, %v1457
        %vm1468 = vcmask 130048
        %v1469 = vsel %vm1468, %v1467, %v1461
        %vm1470 = vcmask 195584
        %v1471 = vsel %vm1470, %v1469, %v1465
        %v1472 = vpack.c.bf16 %v1471, %v1471
        %v1473 = vld [vmem:[#allocation7] sm:$0xff]
        %v1474 = vld [vmem:[#allocation7 + $0x8] sm:$0xff]
        %v1475 = vld [vmem:[#allocation7 + $0x10] sm:$0xff]
        %v1476 = vld [vmem:[#allocation7 + $0x18] sm:$0xff]
        %v1477 = vpack.c.bf16 %v1474, %v1473
        %v1478 = vpack.c.bf16 %v1476, %v1475
        %v1479 = vld [vmem:[%s4] sm:$0x1]
        %v1481 = vlaneseq
        %v1482 = vshrl.u32 %v1481, 7
        %v1483 = vsub.s32 0, %v1482
        %v1484 = vrot.slane %v1479, %v1483
        %v1487 = vsel %vm285, %v1472, 0
        %1489 = vmatprep.subr.bf16.mxu0 0
        %1490 = vmatpush1.bf16.msra.mxu0 %v1477
        %1491 = vmatprep.subr.bf16.mxu0 0
        %1492 = vmatpush1.bf16.msra.mxu0 %v1478
        %1493 = vmatprep.subr.bf16.mxu0 0
        %1494 = vmatpush1.bf16.msra.mxu0 0
        %1495 = vmatprep.subr.bf16.mxu0 0
        %1496 = vmatpush1.bf16.msra.mxu0 0
        %1497 = vmatprep.subr.bf16.mxu0 0
        %1498 = vmatpush1.bf16.msra.mxu0 0
        %1499 = vmatprep.subr.bf16.mxu0 0
        %1500 = vmatpush1.bf16.msra.mxu0 0
        %1501 = vmatprep.subr.bf16.mxu0 0
        %1502 = vmatpush1.bf16.msra.mxu0 0
        %1503 = vmatprep.subr.bf16.mxu0 0
        %1504 = vmatpush1.bf16.msra.mxu0 0
        %1505 = vmatprep.subr.bf16.mxu0 0
        %1506 = vmatpush1.bf16.msra.mxu0 0
        %1507 = vmatprep.subr.bf16.mxu0 0
        %1508 = vmatpush1.bf16.msra.mxu0 0
        %1509 = vmatprep.subr.bf16.mxu0 0
        %1510 = vmatpush1.bf16.msra.mxu0 0
        %1511 = vmatprep.subr.bf16.mxu0 0
        %1512 = vmatpush1.bf16.msra.mxu0 0
        %1513 = vmatprep.subr.bf16.mxu0 0
        %1514 = vmatpush1.bf16.msra.mxu0 0
        %1515 = vmatprep.subr.bf16.mxu0 0
        %1516 = vmatpush1.bf16.msra.mxu0 0
        %1517 = vmatprep.subr.bf16.mxu0 0
        %1518 = vmatpush1.bf16.msra.mxu0 0
        %1519 = vmatprep.subr.bf16.mxu0 0
        %1520 = vmatpush1.bf16.msra.mxu0 0
        %1521 = vmatprep.mubr.bf16.mxu0 0
        %1522 = vmatmul.mubr.bf16.gmra.mrb[0].mxu0 %v1487
        %v1523 = vpop.f32.mrb[0].mxu0
        %v1524 = vadd.f32 %v1484, %v1523
        %v1525 = vpop.f32.mrb[0].mxu0
        %v1526 = vpop.f32.mrb[0].mxu0
        %v1527 = vpop.f32.mrb[0].mxu0
        %1528 = vdwg.mxu0
        %1529 = vst.msk [vmem:[%s268] sm:$0xff] %vm285, %v1524
        %s1530 = sand.u32 %s141, 1
        %s1531 = scalar_lea.sflag [#allocation4], %s1530
        %s1532 = sand.u32 %s141, 1
        %s1533 = smul.addr %s1532, 8
        %s1534 = scalar_lea.vmem [#allocation8], %s1533
        // Predicated region
        $region53: #{tpu_custom_call.1} parent=39 // pred_check
          %p1535 = pneg %p151
        $region54: #{tpu_custom_call.1} parent=39 // pred_check_branch
          %1537 = sbr.rel (%p1535) target = $region56
        $region55: #{tpu_custom_call.1} parent=39 // pred_region
          %s1539 = ssub.s32 128, 128
          %1540 = vsyncadd %s1531, %s1539
          %s1541 = smul.addr %s23, 128
          %s1542 = scalar_lea.hbm %s5, %s1541
          %s1544 = sshll.u32 %s1534, 4
          %s1545 = int_to_ptr.vmem [resolvable:$true] %s1544
          %1547 = dma.vmem_to_hbm [thread:$0]  %s1545, 128, %s1542, %s1531
        $region56: #{tpu_custom_call.1} parent=39 // pred_fallthru
          _
      $region40: #{tpu_custom_call.1} parent=5 // pred_fallthru
        _
      %p1548 = scmp.le.s32.totalorder 2, %s18
      // Predicated region
      $region57: #{tpu_custom_call.1} parent=5 // pred_check
        %p1549 = pneg %p1548
      $region58: #{tpu_custom_call.1} parent=5 // pred_check_branch
        %1551 = sbr.rel (%p1549) target = $region60
      $region59: #{tpu_custom_call.1} parent=5 // pred_region
        %s1552 = ssub.s32 %s18, 2
        // Predicated region
        $region61: #{tpu_custom_call.1} parent=59 // pred_check
          %p1553 = pneg %p157
        $region62: #{tpu_custom_call.1} parent=59 // pred_check_branch
          %1555 = sbr.rel (%p1553) target = $region64
        $region63: #{tpu_custom_call.1} parent=59 // pred_region
          %s1556 = sand.u32 %s142, 1
          %s1557 = scalar_lea.sflag [#allocation4], %s1556
          %s1558 = sand.u32 %s142, 1
          %s1559 = smul.addr %s1558, 8
          %s1560 = scalar_lea.vmem [#allocation8], %s1559
          %1561 = dma.done %s1557, 128
        $region64: #{tpu_custom_call.1} parent=59 // pred_fallthru
          _
      $region60: #{tpu_custom_call.1} parent=5 // pred_fallthru
        _
    $region6: #{tpu_custom_call.1} parent=1 // loop_footer
      %s22 = sadd.s32 1, %s18
    $region7: #{tpu_custom_call.1} parent=1 // loop_footer_branch
      %17 = sbr.rel target = $region3
    $region8: #{tpu_custom_call.1} parent=1 // loop_exit
      _
    %1562 = vsyncpa [#allocation3], 1
    %s1563 = scalar_lea.sflag [#allocation3], 1
    %1564 = vsyncpa %s1563, 1
    %1565 = vsyncpa [#allocation6], 1
    %1566 = vsyncpa [#allocation4], 1
    %s1567 = scalar_lea.sflag [#allocation4], 1
    %1568 = vsyncpa %s1567, 1

</llo_original>
